<compile_context>
chip_gen: v7x
topology: tpu7x:2x2x1
jax: 0.10.0
libtpu: 0.0.40
codegen_flags: <defaults>
</compile_context>

<pallas_src>
import functools
import math

import jax
import jax.numpy as jnp
from jax import lax
from jax.experimental import pallas as pl
from jax.experimental.pallas import tpu as pltpu

NUM_HEAD = 4
DIM = 256
HEAD_DIM = DIM // NUM_HEAD
LN_EPS = 1e-5
CONV_K = 4


def _round_up(n, m):
    return ((n + m - 1) // m) * m


# ----------------------------------------------------------------------------
# Fused kernel: conv-as-matmul + multi-head attention + LN + proj + GELU
# residual + feed-forward residual, for a tile of Bt batch elements.
# ----------------------------------------------------------------------------
def fused_encoder_kernel(xp_ref, wx_ref, wqkv_ref, ln_g_ref, ln_b_ref,
                         wproj_ref, bproj_ref, wff_ref, bff_ref, o_ref,
                         *, bt, seq_len):
    L = seq_len
    D = DIM
    H = NUM_HEAD
    hd = HEAD_DIM
    scale = float(hd) ** -0.5

    xp = xp_ref[...]                                              # (tm, CK) bf16

    # Residual base: Conv1d(k=4, s=4, no bias) as one matmul (f32 accumulate).
    x = jnp.dot(xp, wx_ref[...], preferred_element_type=jnp.float32)   # (tm, D)

    # QKV straight from the conv patches via the pre-fused (Wconv @ Wqkv)
    # weight: contraction over Cin*K instead of D.
    qkv = jnp.dot(xp, wqkv_ref[...], preferred_element_type=jnp.float32)  # (tm, 3D)
    # Cast once to bf16 BEFORE any head slicing (halves relayout bytes).
    qkv = qkv.astype(jnp.bfloat16)

    # Lane-aligned q/k/v slices; row split (bt*L -> bt, L) is an outer-dim
    # reshape (free when L is a multiple of the sublane tile).
    q = qkv[:, :D].reshape(bt, L, D)
    k = qkv[:, D:2 * D].reshape(bt, L, D)
    v = qkv[:, 2 * D:].reshape(bt, L, D)

    # Per-head attention: each 64-lane slice feeds the MXU einsum directly (no
    # head-major stacking / leading-axis concats / merge slices).  Only one
    # head's (bt, L, L) f32 scores are live at a time.
    # TODO(synk): for very long L (>~1k) a flash-style online-softmax KV tiling
    # would be needed to keep the L^2 scores inside VMEM; not implemented.
    ctx_parts = []
    for h in range(H):
        sl = slice(h * hd, (h + 1) * hd)
        s = jnp.einsum('bld,bmd->blm', q[:, :, sl], k[:, :, sl],
                       preferred_element_type=jnp.float32) * scale    # (bt, L, L)
        s = s - jnp.max(s, axis=-1, keepdims=True)
        p = jnp.exp(s)
        p = p * pl.reciprocal(jnp.sum(p, axis=-1, keepdims=True), approx=True)
        ctx_parts.append(
            jnp.einsum('blm,bmd->bld', p.astype(jnp.bfloat16), v[:, :, sl],
                       preferred_element_type=jnp.float32))           # (bt, L, hd)
    # Single lane concat merges the heads back into the channel dim.
    xm = jnp.concatenate(ctx_parts, axis=-1).reshape(bt * L, D)       # (tm, D)

    # LayerNorm over channels (f32).
    mean = jnp.mean(xm, axis=-1, keepdims=True)
    var = jnp.mean(jnp.square(xm - mean), axis=-1, keepdims=True)
    xn = (xm - mean) * lax.rsqrt(var + LN_EPS)
    xn = xn * ln_g_ref[...] + ln_b_ref[...]

    # Output projection (+bias), tanh GELU (EUP slot; ~1e-3 off exact erf GELU,
    # well inside tolerance), attention residual.
    y = jnp.dot(xn.astype(jnp.bfloat16), wproj_ref[...],
                preferred_element_type=jnp.float32) + bproj_ref[...]
    x1 = x + jax.nn.gelu(y, approximate=True)

    # FeedForward (dropout = identity in eval, Linear D->D) + residual.
    x2 = x1 + (jnp.dot(x1.astype(jnp.bfloat16), wff_ref[...],
                       preferred_element_type=jnp.float32) + bff_ref[...])

    o_ref[...] = x2


# ----------------------------------------------------------------------------
# Batch-tile heuristic: rows-per-step target, tiling-rule compliance, VMEM cap
# on the L^2 attention term, and >= 2 grid steps (v7x megacore / pipelining).
# ----------------------------------------------------------------------------
def _pick_batch_tile(B, L, ck):
    g = 16 // math.gcd(L, 16)          # smallest Bt with (Bt*L) % 16 == 0
    if B < g:
        return B, False                # single full-array step (no tiling rule)

    rows_target = 1024                 # amortize per-step overhead (v6e sweet spot)
    bt = max(g, ((rows_target // max(L, 1)) // g) * g)
    bt = min(bt, _round_up(B, g))      # never tile past (padded) B

    def est_vmem(bt_):                 # rough per-step live-bytes model
        tm = bt_ * L
        act = 16 * tm * DIM * 4                      # f32/bf16 activation copies
        attn = 3 * bt_ * L * L * 4                   # one head's scores/probs
        io = 2 * (tm * ck * 2 + tm * DIM * 4)        # double-buffered in/out tiles
        wts = 4 * (ck * 4 * DIM + 2 * DIM * DIM)     # resident weights (bf16, dbl-buf)
        return act + attn + io + wts

    budget = 24 << 20                  # conservative: safe on v7x 64 MiB / v5e
    while bt > g and est_vmem(bt) > budget:
        bt -= g

    # Keep the grid >= 2 (ideally 4) steps so both v7x TensorCores get work and
    # the patch/output DMAs pipeline with compute.
    for min_steps in (4, 2):
        cap = ((-(-B // min_steps)) // g) * g
        if cap >= g:
            bt = min(bt, cap)
            break
    return bt, True


# ----------------------------------------------------------------------------
# Wrapper: im2col + weight prep in XLA, fused pallas_call, final NCW permute.
# ----------------------------------------------------------------------------
def encoder_forward(x, params):
    """x: (B, C_in, T) float32 -> (B, 256, T//4) float32 (PyTorch NCW layout)."""
    B, Cin, T = x.shape
    K = CONV_K
    L = T // K
    D = DIM
    CK = Cin * K

    # im2col for the non-overlapping stride==kernel conv (tiny pass on raw x).
    xp = x[:, :, :L * K].reshape(B, Cin, L, K).transpose(0, 2, 1, 3)
    xp = xp.reshape(B, L, CK)

    Bt, tiled = _pick_batch_tile(B, L, CK)
    if tiled:
        Bp = _round_up(B, Bt)
        if Bp != B:
            xp = jnp.pad(xp, ((0, Bp - B), (0, 0), (0, 0)))
    else:
        Bp = B

    # Patches stay at their native Cin*K lane width (no 128-lane zero pad in
    # HBM): the block's last dim equals the full array extent.
    xp2 = xp.reshape(Bp * L, CK).astype(jnp.bfloat16)

    # Weight prep: f32 math in XLA, bf16 MXU operands (f32 accumulation in-kernel).
    w_conv2d = params["w_conv"].reshape(D, CK).T                   # (CK, D) f32
    w_x = w_conv2d.astype(jnp.bfloat16)                            # residual base
    w_qkv = (w_conv2d @ params["wqkv_t"]).astype(jnp.bfloat16)     # (CK, 3D) fused
    w_proj = params["wproj_t"].astype(jnp.bfloat16)
    w_ff = params["wff_t"].astype(jnp.bfloat16)

    tm = Bt * L
    full = lambda shape: pl.BlockSpec(shape, lambda b: (0,) * len(shape))

    out = pl.pallas_call(
        functools.partial(fused_encoder_kernel, bt=Bt, seq_len=L),
        out_shape=jax.ShapeDtypeStruct((Bp * L, D), jnp.float32),
        grid_spec=pltpu.PrefetchScalarGridSpec(
            num_scalar_prefetch=0,
            grid=(Bp // Bt,),
            in_specs=[
                pl.BlockSpec((tm, CK), lambda b: (b, 0)),   # conv patches (unpadded)
                full((CK, D)),                              # Wconv^T (residual base)
                full((CK, 3 * D)),                          # Wconv^T @ Wqkv^T (fused)
                full((1, D)),                               # LN gamma
                full((1, D)),                               # LN beta
                full((D, D)),                               # Wproj^T
                full((1, D)),                               # bproj
                full((D, D)),                               # Wff^T
                full((1, D)),                               # bff
            ],
            out_specs=pl.BlockSpec((tm, D), lambda b: (b, 0)),
        ),
        compiler_params=pltpu.CompilerParams(
            dimension_semantics=("parallel",),
            vmem_limit_bytes=48 * 1024 * 1024),
    )(xp2, w_x, w_qkv, params["ln_g"], params["ln_b"],
      w_proj, params["bproj"], w_ff, params["bff"])

    out = out.reshape(Bp, L, D)[:B]
    # Final PyTorch NCW permute kept outside the kernel so the kernel's own
    # out_spec stays lane-dense on D=256.
    return jnp.transpose(out, (0, 2, 1))


# ----------------------------------------------------------------------------
# Pure-JAX reference (mirrors the PyTorch module, f32) for a sanity check.
# ----------------------------------------------------------------------------
def encoder_reference(x, params):
    B, Cin, T = x.shape
    K = CONV_K
    L = T // K
    D, H, hd = DIM, NUM_HEAD, HEAD_DIM
    xp = x[:, :, :L * K].reshape(B, Cin, L, K).transpose(0, 2, 1, 3)
    xp = xp.reshape(B, L, Cin * K)
    h0 = xp @ params["w_conv"].reshape(D, Cin * K).T               # (B, L, D)
    qkv = h0 @ params["wqkv_t"]                                    # (B, L, 3D)
    qkv = qkv.reshape(B, L, 3, H, hd).transpose(2, 0, 3, 1, 4)     # (3,B,H,L,hd)
    q, k, v = qkv[0], qkv[1], qkv[2]
    attn = jnp.einsum('bhld,bhmd->bhlm', q, k) * (float(hd) ** -0.5)
    attn = jax.nn.softmax(attn, axis=-1)
    ctx = jnp.einsum('bhlm,bhmd->bhld', attn, v)
    ctx = ctx.transpose(0, 2, 1, 3).reshape(B, L, D)
    mean = ctx.mean(-1, keepdims=True)
    var = ((ctx - mean) ** 2).mean(-1, keepdims=True)
    xn = (ctx - mean) / jnp.sqrt(var + LN_EPS)
    xn = xn * params["ln_g"] + params["ln_b"]
    y = xn @ params["wproj_t"] + params["bproj"]
    x1 = h0 + jax.nn.gelu(y, approximate=False)
    x2 = x1 + (x1 @ params["wff_t"] + params["bff"])
    return x2.transpose(0, 2, 1)


def init_params(key, input_dim):
    ks = jax.random.split(key, 7)
    s = 0.05
    # nn.Linear weight is (out, in); we pre-transpose for x @ W^T.
    return {
        "w_conv":  s * jax.random.normal(ks[0], (DIM, input_dim, CONV_K), jnp.float32),
        "wqkv_t":  (s * jax.random.normal(ks[1], (3 * DIM, DIM), jnp.float32)).T,
        "ln_g":    (1.0 + 0.1 * jax.random.normal(ks[2], (DIM,), jnp.float32)).reshape(1, DIM),
        "ln_b":    (0.1 * jax.random.normal(ks[3], (DIM,), jnp.float32)).reshape(1, DIM),
        "wproj_t": (s * jax.random.normal(ks[4], (DIM, DIM), jnp.float32)).T,
        "bproj":   (s * jax.random.normal(ks[5], (DIM,), jnp.float32)).reshape(1, DIM),
        "wff_t":   (s * jax.random.normal(ks[6], (DIM, DIM), jnp.float32)).T,
        "bff":     jnp.zeros((1, DIM), jnp.float32),
    }


if __name__ == "__main__":
    key = jax.random.PRNGKey(0)
    k_param, k_x = jax.random.split(key)

    B, C_in, T = 2, 4, 64            # -> conv output length L = 16
    params = init_params(k_param, C_in)
    x = jax.random.normal(k_x, (B, C_in, T), jnp.float32)

    fwd = jax.jit(functools.partial(encoder_forward, params=params))
    out = jax.block_until_ready(fwd(x))

    assert out.shape == (B, DIM, T // CONV_K), out.shape
    assert bool(jnp.all(jnp.isfinite(out)))

    # Loose tolerance: bf16 MXU operands (f32 accumulation), tanh GELU,
    # approx reciprocal in the softmax denominator.
    ref = encoder_reference(x, params)
    rel_err = float(jnp.max(jnp.abs(out - ref)) / (jnp.max(jnp.abs(ref)) + 1e-6))
    assert rel_err < 5e-2, rel_err

    print("KERNEL_OK")
</pallas_src>

<mosaic_0001>
module attributes {stable_mosaic.version = 11 : i64} {
  func.func @fused_encoder_kernel(%arg0: i32, %arg1: memref<16x16xbf16, #tpu.memory_space<vmem>>, %arg2: memref<16x256xbf16, #tpu.memory_space<vmem>>, %arg3: memref<16x768xbf16, #tpu.memory_space<vmem>>, %arg4: memref<1x256xf32, #tpu.memory_space<vmem>>, %arg5: memref<1x256xf32, #tpu.memory_space<vmem>>, %arg6: memref<256x256xbf16, #tpu.memory_space<vmem>>, %arg7: memref<1x256xf32, #tpu.memory_space<vmem>>, %arg8: memref<256x256xbf16, #tpu.memory_space<vmem>>, %arg9: memref<1x256xf32, #tpu.memory_space<vmem>>, %arg10: memref<16x256xf32, #tpu.memory_space<vmem>>) attributes {dimension_semantics = [#tpu.dimension_semantics<parallel>], iteration_bounds = array<i64: 2>, scalar_prefetch = 0 : i64, scratch_operands = 0 : i64, tpu.core_type = #tpu.core_type<tc>, window_params = [{transform_indices = @transform_0, window_bounds = array<i64: 16, 16>}, {pipeline_mode = #tpu.pipeline_mode<synchronous>, transform_indices = @transform_1, window_bounds = array<i64: 16, 256>}, {pipeline_mode = #tpu.pipeline_mode<synchronous>, transform_indices = @transform_2, window_bounds = array<i64: 16, 768>}, {pipeline_mode = #tpu.pipeline_mode<synchronous>, transform_indices = @transform_3, window_bounds = array<i64: 1, 256>}, {pipeline_mode = #tpu.pipeline_mode<synchronous>, transform_indices = @transform_4, window_bounds = array<i64: 1, 256>}, {pipeline_mode = #tpu.pipeline_mode<synchronous>, transform_indices = @transform_5, window_bounds = array<i64: 256, 256>}, {pipeline_mode = #tpu.pipeline_mode<synchronous>, transform_indices = @transform_6, window_bounds = array<i64: 1, 256>}, {pipeline_mode = #tpu.pipeline_mode<synchronous>, transform_indices = @transform_7, window_bounds = array<i64: 256, 256>}, {pipeline_mode = #tpu.pipeline_mode<synchronous>, transform_indices = @transform_8, window_bounds = array<i64: 1, 256>}, {transform_indices = @transform_9, window_bounds = array<i64: 16, 256>}]} {
    %c0 = arith.constant 0 : index
    %c0_0 = arith.constant 0 : index
    %0 = vector.load %arg1[%c0, %c0_0] : memref<16x16xbf16, #tpu.memory_space<vmem>>, vector<16x16xbf16>
    %c0_1 = arith.constant 0 : index
    %c0_2 = arith.constant 0 : index
    %1 = vector.load %arg2[%c0_1, %c0_2] : memref<16x256xbf16, #tpu.memory_space<vmem>>, vector<16x256xbf16>
    %cst = arith.constant dense<0.000000e+00> : vector<16x256xf32>
    %2 = tpu.matmul %0, %1, %cst {dimension_numbers = #tpu.dot_dimension_numbers<[1], [0], [0], [1], [0, 0, 1, 1], [], []>} : vector<16x16xbf16>, vector<16x256xbf16>, vector<16x256xf32> -> vector<16x256xf32>
    %c0_3 = arith.constant 0 : index
    %c0_4 = arith.constant 0 : index
    %3 = vector.load %arg3[%c0_3, %c0_4] : memref<16x768xbf16, #tpu.memory_space<vmem>>, vector<16x768xbf16>
    %cst_5 = arith.constant dense<0.000000e+00> : vector<16x768xf32>
    %4 = tpu.matmul %0, %3, %cst_5 {dimension_numbers = #tpu.dot_dimension_numbers<[1], [0], [0], [1], [0, 0, 1, 1], [], []>} : vector<16x16xbf16>, vector<16x768xbf16>, vector<16x768xf32> -> vector<16x768xf32>
    %5 = arith.truncf %4 : vector<16x768xf32> to vector<16x768xbf16>
    %6 = vector.extract_strided_slice %5 {offsets = [0, 0], sizes = [16, 256], strides = [1, 1]} : vector<16x768xbf16> to vector<16x256xbf16>
    %7 = vector.shape_cast %6 : vector<16x256xbf16> to vector<1x16x256xbf16>
    %8 = vector.extract_strided_slice %5 {offsets = [0, 256], sizes = [16, 256], strides = [1, 1]} : vector<16x768xbf16> to vector<16x256xbf16>
    %9 = vector.shape_cast %8 : vector<16x256xbf16> to vector<1x16x256xbf16>
    %10 = vector.extract_strided_slice %5 {offsets = [0, 512], sizes = [16, 256], strides = [1, 1]} : vector<16x768xbf16> to vector<16x256xbf16>
    %11 = vector.shape_cast %10 : vector<16x256xbf16> to vector<1x16x256xbf16>
    %12 = vector.extract_strided_slice %7 {offsets = [0, 0, 0], sizes = [1, 16, 64], strides = [1, 1, 1]} : vector<1x16x256xbf16> to vector<1x16x64xbf16>
    %13 = vector.extract_strided_slice %9 {offsets = [0, 0, 0], sizes = [1, 16, 64], strides = [1, 1, 1]} : vector<1x16x256xbf16> to vector<1x16x64xbf16>
    "tpu.trace_start"() <{level = 10 : i32, message = "bld,bmd->blm"}> : () -> ()
    %cst_6 = arith.constant dense<0.000000e+00> : vector<1x16x16xf32>
    %14 = tpu.matmul %12, %13, %cst_6 {dimension_numbers = #tpu.dot_dimension_numbers<[2], [2], [1], [1], [0, 0, 0, 1, 1, 1], [0], [0]>} : vector<1x16x64xbf16>, vector<1x16x64xbf16>, vector<1x16x16xf32> -> vector<1x16x16xf32>
    "tpu.trace_stop"() : () -> ()
    %cst_7 = arith.constant 1.250000e-01 : f32
    %15 = vector.broadcast %cst_7 : f32 to vector<1x16x16xf32>
    %16 = arith.mulf %14, %15 : vector<1x16x16xf32>
    %cst_8 = arith.constant dense<0xFF800000> : vector<1x16xf32>
    %17 = vector.multi_reduction <maximumf>, %16, %cst_8 [2] : vector<1x16x16xf32> to vector<1x16xf32>
    %18 = vector.shape_cast %17 : vector<1x16xf32> to vector<1x16x1xf32>
    %19 = vector.broadcast %18 : vector<1x16x1xf32> to vector<1x16x16xf32>
    %20 = arith.subf %16, %19 : vector<1x16x16xf32>
    %21 = math.exp %20 : vector<1x16x16xf32>
    %cst_9 = arith.constant dense<0.000000e+00> : vector<1x16xf32>
    %22 = vector.multi_reduction <add>, %21, %cst_9 [2] : vector<1x16x16xf32> to vector<1x16xf32>
    %23 = vector.shape_cast %22 : vector<1x16xf32> to vector<1x16x1xf32>
    %24 = tpu.reciprocal %23 {approx = true} : vector<1x16x1xf32> -> vector<1x16x1xf32>
    %25 = vector.broadcast %24 : vector<1x16x1xf32> to vector<1x16x16xf32>
    %26 = arith.mulf %21, %25 : vector<1x16x16xf32>
    %27 = arith.truncf %26 : vector<1x16x16xf32> to vector<1x16x16xbf16>
    %28 = vector.extract_strided_slice %11 {offsets = [0, 0, 0], sizes = [1, 16, 64], strides = [1, 1, 1]} : vector<1x16x256xbf16> to vector<1x16x64xbf16>
    "tpu.trace_start"() <{level = 10 : i32, message = "blm,bmd->bld"}> : () -> ()
    %cst_10 = arith.constant dense<0.000000e+00> : vector<1x16x64xf32>
    %29 = tpu.matmul %27, %28, %cst_10 {dimension_numbers = #tpu.dot_dimension_numbers<[2], [1], [1], [2], [0, 0, 0, 1, 1, 2], [0], [0]>} : vector<1x16x16xbf16>, vector<1x16x64xbf16>, vector<1x16x64xf32> -> vector<1x16x64xf32>
    "tpu.trace_stop"() : () -> ()
    %30 = vector.extract_strided_slice %7 {offsets = [0, 0, 64], sizes = [1, 16, 64], strides = [1, 1, 1]} : vector<1x16x256xbf16> to vector<1x16x64xbf16>
    %31 = vector.extract_strided_slice %9 {offsets = [0, 0, 64], sizes = [1, 16, 64], strides = [1, 1, 1]} : vector<1x16x256xbf16> to vector<1x16x64xbf16>
    "tpu.trace_start"() <{level = 10 : i32, message = "bld,bmd->blm"}> : () -> ()
    %cst_11 = arith.constant dense<0.000000e+00> : vector<1x16x16xf32>
    %32 = tpu.matmul %30, %31, %cst_11 {dimension_numbers = #tpu.dot_dimension_numbers<[2], [2], [1], [1], [0, 0, 0, 1, 1, 1], [0], [0]>} : vector<1x16x64xbf16>, vector<1x16x64xbf16>, vector<1x16x16xf32> -> vector<1x16x16xf32>
    "tpu.trace_stop"() : () -> ()
    %cst_12 = arith.constant 1.250000e-01 : f32
    %33 = vector.broadcast %cst_12 : f32 to vector<1x16x16xf32>
    %34 = arith.mulf %32, %33 : vector<1x16x16xf32>
    %cst_13 = arith.constant dense<0xFF800000> : vector<1x16xf32>
    %35 = vector.multi_reduction <maximumf>, %34, %cst_13 [2] : vector<1x16x16xf32> to vector<1x16xf32>
    %36 = vector.shape_cast %35 : vector<1x16xf32> to vector<1x16x1xf32>
    %37 = vector.broadcast %36 : vector<1x16x1xf32> to vector<1x16x16xf32>
    %38 = arith.subf %34, %37 : vector<1x16x16xf32>
    %39 = math.exp %38 : vector<1x16x16xf32>
    %cst_14 = arith.constant dense<0.000000e+00> : vector<1x16xf32>
    %40 = vector.multi_reduction <add>, %39, %cst_14 [2] : vector<1x16x16xf32> to vector<1x16xf32>
    %41 = vector.shape_cast %40 : vector<1x16xf32> to vector<1x16x1xf32>
    %42 = tpu.reciprocal %41 {approx = true} : vector<1x16x1xf32> -> vector<1x16x1xf32>
    %43 = vector.broadcast %42 : vector<1x16x1xf32> to vector<1x16x16xf32>
    %44 = arith.mulf %39, %43 : vector<1x16x16xf32>
    %45 = arith.truncf %44 : vector<1x16x16xf32> to vector<1x16x16xbf16>
    %46 = vector.extract_strided_slice %11 {offsets = [0, 0, 64], sizes = [1, 16, 64], strides = [1, 1, 1]} : vector<1x16x256xbf16> to vector<1x16x64xbf16>
    "tpu.trace_start"() <{level = 10 : i32, message = "blm,bmd->bld"}> : () -> ()
    %cst_15 = arith.constant dense<0.000000e+00> : vector<1x16x64xf32>
    %47 = tpu.matmul %45, %46, %cst_15 {dimension_numbers = #tpu.dot_dimension_numbers<[2], [1], [1], [2], [0, 0, 0, 1, 1, 2], [0], [0]>} : vector<1x16x16xbf16>, vector<1x16x64xbf16>, vector<1x16x64xf32> -> vector<1x16x64xf32>
    "tpu.trace_stop"() : () -> ()
    %48 = vector.extract_strided_slice %7 {offsets = [0, 0, 128], sizes = [1, 16, 64], strides = [1, 1, 1]} : vector<1x16x256xbf16> to vector<1x16x64xbf16>
    %49 = vector.extract_strided_slice %9 {offsets = [0, 0, 128], sizes = [1, 16, 64], strides = [1, 1, 1]} : vector<1x16x256xbf16> to vector<1x16x64xbf16>
    "tpu.trace_start"() <{level = 10 : i32, message = "bld,bmd->blm"}> : () -> ()
    %cst_16 = arith.constant dense<0.000000e+00> : vector<1x16x16xf32>
    %50 = tpu.matmul %48, %49, %cst_16 {dimension_numbers = #tpu.dot_dimension_numbers<[2], [2], [1], [1], [0, 0, 0, 1, 1, 1], [0], [0]>} : vector<1x16x64xbf16>, vector<1x16x64xbf16>, vector<1x16x16xf32> -> vector<1x16x16xf32>
    "tpu.trace_stop"() : () -> ()
    %cst_17 = arith.constant 1.250000e-01 : f32
    %51 = vector.broadcast %cst_17 : f32 to vector<1x16x16xf32>
    %52 = arith.mulf %50, %51 : vector<1x16x16xf32>
    %cst_18 = arith.constant dense<0xFF800000> : vector<1x16xf32>
    %53 = vector.multi_reduction <maximumf>, %52, %cst_18 [2] : vector<1x16x16xf32> to vector<1x16xf32>
    %54 = vector.shape_cast %53 : vector<1x16xf32> to vector<1x16x1xf32>
    %55 = vector.broadcast %54 : vector<1x16x1xf32> to vector<1x16x16xf32>
    %56 = arith.subf %52, %55 : vector<1x16x16xf32>
    %57 = math.exp %56 : vector<1x16x16xf32>
    %cst_19 = arith.constant dense<0.000000e+00> : vector<1x16xf32>
    %58 = vector.multi_reduction <add>, %57, %cst_19 [2] : vector<1x16x16xf32> to vector<1x16xf32>
    %59 = vector.shape_cast %58 : vector<1x16xf32> to vector<1x16x1xf32>
    %60 = tpu.reciprocal %59 {approx = true} : vector<1x16x1xf32> -> vector<1x16x1xf32>
    %61 = vector.broadcast %60 : vector<1x16x1xf32> to vector<1x16x16xf32>
    %62 = arith.mulf %57, %61 : vector<1x16x16xf32>
    %63 = arith.truncf %62 : vector<1x16x16xf32> to vector<1x16x16xbf16>
    %64 = vector.extract_strided_slice %11 {offsets = [0, 0, 128], sizes = [1, 16, 64], strides = [1, 1, 1]} : vector<1x16x256xbf16> to vector<1x16x64xbf16>
    "tpu.trace_start"() <{level = 10 : i32, message = "blm,bmd->bld"}> : () -> ()
    %cst_20 = arith.constant dense<0.000000e+00> : vector<1x16x64xf32>
    %65 = tpu.matmul %63, %64, %cst_20 {dimension_numbers = #tpu.dot_dimension_numbers<[2], [1], [1], [2], [0, 0, 0, 1, 1, 2], [0], [0]>} : vector<1x16x16xbf16>, vector<1x16x64xbf16>, vector<1x16x64xf32> -> vector<1x16x64xf32>
    "tpu.trace_stop"() : () -> ()
    %66 = vector.extract_strided_slice %7 {offsets = [0, 0, 192], sizes = [1, 16, 64], strides = [1, 1, 1]} : vector<1x16x256xbf16> to vector<1x16x64xbf16>
    %67 = vector.extract_strided_slice %9 {offsets = [0, 0, 192], sizes = [1, 16, 64], strides = [1, 1, 1]} : vector<1x16x256xbf16> to vector<1x16x64xbf16>
    "tpu.trace_start"() <{level = 10 : i32, message = "bld,bmd->blm"}> : () -> ()
    %cst_21 = arith.constant dense<0.000000e+00> : vector<1x16x16xf32>
    %68 = tpu.matmul %66, %67, %cst_21 {dimension_numbers = #tpu.dot_dimension_numbers<[2], [2], [1], [1], [0, 0, 0, 1, 1, 1], [0], [0]>} : vector<1x16x64xbf16>, vector<1x16x64xbf16>, vector<1x16x16xf32> -> vector<1x16x16xf32>
    "tpu.trace_stop"() : () -> ()
    %cst_22 = arith.constant 1.250000e-01 : f32
    %69 = vector.broadcast %cst_22 : f32 to vector<1x16x16xf32>
    %70 = arith.mulf %68, %69 : vector<1x16x16xf32>
    %cst_23 = arith.constant dense<0xFF800000> : vector<1x16xf32>
    %71 = vector.multi_reduction <maximumf>, %70, %cst_23 [2] : vector<1x16x16xf32> to vector<1x16xf32>
    %72 = vector.shape_cast %71 : vector<1x16xf32> to vector<1x16x1xf32>
    %73 = vector.broadcast %72 : vector<1x16x1xf32> to vector<1x16x16xf32>
    %74 = arith.subf %70, %73 : vector<1x16x16xf32>
    %75 = math.exp %74 : vector<1x16x16xf32>
    %cst_24 = arith.constant dense<0.000000e+00> : vector<1x16xf32>
    %76 = vector.multi_reduction <add>, %75, %cst_24 [2] : vector<1x16x16xf32> to vector<1x16xf32>
    %77 = vector.shape_cast %76 : vector<1x16xf32> to vector<1x16x1xf32>
    %78 = tpu.reciprocal %77 {approx = true} : vector<1x16x1xf32> -> vector<1x16x1xf32>
    %79 = vector.broadcast %78 : vector<1x16x1xf32> to vector<1x16x16xf32>
    %80 = arith.mulf %75, %79 : vector<1x16x16xf32>
    %81 = arith.truncf %80 : vector<1x16x16xf32> to vector<1x16x16xbf16>
    %82 = vector.extract_strided_slice %11 {offsets = [0, 0, 192], sizes = [1, 16, 64], strides = [1, 1, 1]} : vector<1x16x256xbf16> to vector<1x16x64xbf16>
    "tpu.trace_start"() <{level = 10 : i32, message = "blm,bmd->bld"}> : () -> ()
    %cst_25 = arith.constant dense<0.000000e+00> : vector<1x16x64xf32>
    %83 = tpu.matmul %81, %82, %cst_25 {dimension_numbers = #tpu.dot_dimension_numbers<[2], [1], [1], [2], [0, 0, 0, 1, 1, 2], [0], [0]>} : vector<1x16x16xbf16>, vector<1x16x64xbf16>, vector<1x16x64xf32> -> vector<1x16x64xf32>
    "tpu.trace_stop"() : () -> ()
    %84 = tpu.concatenate %29, %47, %65, %83 in 2 : vector<1x16x64xf32>, vector<1x16x64xf32>, vector<1x16x64xf32>, vector<1x16x64xf32> -> vector<1x16x256xf32>
    %85 = vector.shape_cast %84 : vector<1x16x256xf32> to vector<16x256xf32>
    %cst_26 = arith.constant dense<0.000000e+00> : vector<16xf32>
    %86 = vector.multi_reduction <add>, %85, %cst_26 [1] : vector<16x256xf32> to vector<16xf32>
    %87 = vector.shape_cast %86 : vector<16xf32> to vector<16x1xf32>
    %cst_27 = arith.constant 2.560000e+02 : f32
    %88 = vector.broadcast %cst_27 : f32 to vector<16x1xf32>
    %89 = arith.divf %87, %88 : vector<16x1xf32>
    %90 = vector.broadcast %89 : vector<16x1xf32> to vector<16x256xf32>
    %91 = arith.subf %85, %90 : vector<16x256xf32>
    %92 = arith.mulf %91, %91 : vector<16x256xf32>
    %cst_28 = arith.constant dense<0.000000e+00> : vector<16xf32>
    %93 = vector.multi_reduction <add>, %92, %cst_28 [1] : vector<16x256xf32> to vector<16xf32>
    %94 = vector.shape_cast %93 : vector<16xf32> to vector<16x1xf32>
    %cst_29 = arith.constant 2.560000e+02 : f32
    %95 = vector.broadcast %cst_29 : f32 to vector<16x1xf32>
    %96 = arith.divf %94, %95 : vector<16x1xf32>
    %97 = vector.broadcast %89 : vector<16x1xf32> to vector<16x256xf32>
    %98 = arith.subf %85, %97 : vector<16x256xf32>
    %cst_30 = arith.constant 9.99999974E-6 : f32
    %99 = vector.broadcast %cst_30 : f32 to vector<16x1xf32>
    %100 = arith.addf %96, %99 : vector<16x1xf32>
    %101 = math.rsqrt %100 : vector<16x1xf32>
    %102 = vector.broadcast %101 : vector<16x1xf32> to vector<16x256xf32>
    %103 = arith.mulf %98, %102 : vector<16x256xf32>
    %c0_31 = arith.constant 0 : index
    %c0_32 = arith.constant 0 : index
    %104 = vector.load %arg4[%c0_31, %c0_32] : memref<1x256xf32, #tpu.memory_space<vmem>>, vector<1x256xf32>
    %105 = vector.broadcast %104 : vector<1x256xf32> to vector<16x256xf32>
    %106 = arith.mulf %103, %105 : vector<16x256xf32>
    %c0_33 = arith.constant 0 : index
    %c0_34 = arith.constant 0 : index
    %107 = vector.load %arg5[%c0_33, %c0_34] : memref<1x256xf32, #tpu.memory_space<vmem>>, vector<1x256xf32>
    %108 = vector.broadcast %107 : vector<1x256xf32> to vector<16x256xf32>
    %109 = arith.addf %106, %108 : vector<16x256xf32>
    %110 = arith.truncf %109 : vector<16x256xf32> to vector<16x256xbf16>
    %c0_35 = arith.constant 0 : index
    %c0_36 = arith.constant 0 : index
    %111 = vector.load %arg6[%c0_35, %c0_36] : memref<256x256xbf16, #tpu.memory_space<vmem>>, vector<256x256xbf16>
    %cst_37 = arith.constant dense<0.000000e+00> : vector<16x256xf32>
    %112 = tpu.matmul %110, %111, %cst_37 {dimension_numbers = #tpu.dot_dimension_numbers<[1], [0], [0], [1], [0, 0, 1, 1], [], []>} : vector<16x256xbf16>, vector<256x256xbf16>, vector<16x256xf32> -> vector<16x256xf32>
    %c0_38 = arith.constant 0 : index
    %c0_39 = arith.constant 0 : index
    %113 = vector.load %arg7[%c0_38, %c0_39] : memref<1x256xf32, #tpu.memory_space<vmem>>, vector<1x256xf32>
    %114 = vector.broadcast %113 : vector<1x256xf32> to vector<16x256xf32>
    %115 = arith.addf %112, %114 : vector<16x256xf32>
    %116 = arith.mulf %115, %115 : vector<16x256xf32>
    %117 = arith.mulf %115, %116 : vector<16x256xf32>
    %cst_40 = arith.constant 4.471500e-02 : f32
    %118 = vector.broadcast %cst_40 : f32 to vector<16x256xf32>
    %119 = arith.mulf %118, %117 : vector<16x256xf32>
    %120 = arith.addf %115, %119 : vector<16x256xf32>
    %cst_41 = arith.constant 0.797884583 : f32
    %121 = vector.broadcast %cst_41 : f32 to vector<16x256xf32>
    %122 = arith.mulf %121, %120 : vector<16x256xf32>
    %123 = math.tanh %122 : vector<16x256xf32>
    %cst_42 = arith.constant 1.000000e+00 : f32
    %124 = vector.broadcast %cst_42 : f32 to vector<16x256xf32>
    %125 = arith.addf %124, %123 : vector<16x256xf32>
    %cst_43 = arith.constant 5.000000e-01 : f32
    %126 = vector.broadcast %cst_43 : f32 to vector<16x256xf32>
    %127 = arith.mulf %126, %125 : vector<16x256xf32>
    %128 = arith.mulf %115, %127 : vector<16x256xf32>
    %129 = arith.addf %2, %128 : vector<16x256xf32>
    %130 = arith.truncf %129 : vector<16x256xf32> to vector<16x256xbf16>
    %c0_44 = arith.constant 0 : index
    %c0_45 = arith.constant 0 : index
    %131 = vector.load %arg8[%c0_44, %c0_45] : memref<256x256xbf16, #tpu.memory_space<vmem>>, vector<256x256xbf16>
    %cst_46 = arith.constant dense<0.000000e+00> : vector<16x256xf32>
    %132 = tpu.matmul %130, %131, %cst_46 {dimension_numbers = #tpu.dot_dimension_numbers<[1], [0], [0], [1], [0, 0, 1, 1], [], []>} : vector<16x256xbf16>, vector<256x256xbf16>, vector<16x256xf32> -> vector<16x256xf32>
    %c0_47 = arith.constant 0 : index
    %c0_48 = arith.constant 0 : index
    %133 = vector.load %arg9[%c0_47, %c0_48] : memref<1x256xf32, #tpu.memory_space<vmem>>, vector<1x256xf32>
    %134 = vector.broadcast %133 : vector<1x256xf32> to vector<16x256xf32>
    %135 = arith.addf %132, %134 : vector<16x256xf32>
    %136 = arith.addf %129, %135 : vector<16x256xf32>
    %c0_49 = arith.constant 0 : index
    %c0_50 = arith.constant 0 : index
    %137 = vector.load %arg10[%c0_49, %c0_50] : memref<16x256xf32, #tpu.memory_space<vmem>>, vector<16x256xf32>
    tpu.vector_store %arg10[%c0_49, %c0_50], %136 {strides = array<i32>} : memref<16x256xf32, #tpu.memory_space<vmem>>, vector<16x256xf32>,
    return
  }
  func.func @transform_0(%arg0: i32) -> (i32, i32) {
    %c0_i32 = arith.constant 0 : i32
    %c0_i32_0 = arith.constant 0 : i32
    return %arg0, %c0_i32 : i32, i32
  }
  func.func @transform_1(%arg0: i32) -> (i32, i32) {
    %c0_i32 = arith.constant 0 : i32
    %c0_i32_0 = arith.constant 0 : i32
    %c0_i32_1 = arith.constant 0 : i32
    return %c0_i32, %c0_i32_0 : i32, i32
  }
  func.func @transform_2(%arg0: i32) -> (i32, i32) {
    %c0_i32 = arith.constant 0 : i32
    %c0_i32_0 = arith.constant 0 : i32
    %c0_i32_1 = arith.constant 0 : i32
    return %c0_i32, %c0_i32_0 : i32, i32
  }
  func.func @transform_3(%arg0: i32) -> (i32, i32) {
    %c0_i32 = arith.constant 0 : i32
    %c0_i32_0 = arith.constant 0 : i32
    %c0_i32_1 = arith.constant 0 : i32
    return %c0_i32, %c0_i32_0 : i32, i32
  }
  func.func @transform_4(%arg0: i32) -> (i32, i32) {
    %c0_i32 = arith.constant 0 : i32
    %c0_i32_0 = arith.constant 0 : i32
    %c0_i32_1 = arith.constant 0 : i32
    return %c0_i32, %c0_i32_0 : i32, i32
  }
  func.func @transform_5(%arg0: i32) -> (i32, i32) {
    %c0_i32 = arith.constant 0 : i32
    %c0_i32_0 = arith.constant 0 : i32
    %c0_i32_1 = arith.constant 0 : i32
    return %c0_i32, %c0_i32_0 : i32, i32
  }
  func.func @transform_6(%arg0: i32) -> (i32, i32) {
    %c0_i32 = arith.constant 0 : i32
    %c0_i32_0 = arith.constant 0 : i32
    %c0_i32_1 = arith.constant 0 : i32
    return %c0_i32, %c0_i32_0 : i32, i32
  }
  func.func @transform_7(%arg0: i32) -> (i32, i32) {
    %c0_i32 = arith.constant 0 : i32
    %c0_i32_0 = arith.constant 0 : i32
    %c0_i32_1 = arith.constant 0 : i32
    return %c0_i32, %c0_i32_0 : i32, i32
  }
  func.func @transform_8(%arg0: i32) -> (i32, i32) {
    %c0_i32 = arith.constant 0 : i32
    %c0_i32_0 = arith.constant 0 : i32
    %c0_i32_1 = arith.constant 0 : i32
    return %c0_i32, %c0_i32_0 : i32, i32
  }
  func.func @transform_9(%arg0: i32) -> (i32, i32) {
    %c0_i32 = arith.constant 0 : i32
    %c0_i32_0 = arith.constant 0 : i32
    return %arg0, %c0_i32 : i32, i32
  }
}

</mosaic_0001>

<llo_original>
// kernel: encoder_forward.1
$region0: #{encoder_forward.1}
  #allocation0 [shape = 'u32[]', space=smem, size = 0x4, offset = 0x4, fixed_abs, tag = 'smem constant byte address 0x4 - core index']
  #allocation1 [shape = 'u32[144,128]{1,0:T(1,128)}', space=vmem, size = 0x12000, scoped, tag = 'internal scratch']
  %s0 = inlined_call_operand.vmem [shape: bf16[32,16], index: 0, kind: input, shape index: {}]
  %s1 = inlined_call_operand.vmem [shape: bf16[16,256], index: 1, kind: input, shape index: {}]
  %s2 = inlined_call_operand.vmem [shape: bf16[16,768], index: 2, kind: input, shape index: {}]
  %s3 = inlined_call_operand.vmem [shape: f32[1,256], index: 3, kind: input, shape index: {}]
  %s4 = inlined_call_operand.vmem [shape: f32[1,256], index: 4, kind: input, shape index: {}]
  %s5 = inlined_call_operand.vmem [shape: bf16[256,256], index: 5, kind: input, shape index: {}]
  %s6 = inlined_call_operand.vmem [shape: f32[1,256], index: 6, kind: input, shape index: {}]
  %s7 = inlined_call_operand.vmem [shape: bf16[256,256], index: 7, kind: input, shape index: {}]
  %s8 = inlined_call_operand.vmem [shape: f32[1,256], index: 8, kind: input, shape index: {}]
  %s9 = inlined_call_operand.hbm [shape: f32[32,256], index: 9, kind: output, shape index: {}]
  %s10 = sld [smem:[#allocation0]]
  $region69: #{encoder_forward.1} parent=0
    _
  %s12 = ssub.s32 1, %s10
  %s13 = scalar_select 0, %s12, %s10
  $region1: #{encoder_forward.1} parent=0
    #allocation2 [shape = 'u8[32768]{0}', space=vmem, size = 0x8000, scoped, tag = 'output window, operand 0']
    #allocation3 [shape = 's32[2]{0}', space=sflag, size = 0x8, scoped, tag = 'scoped memory for encoder_forward.1']
    %14 = vsyncpa [#allocation3], 0
    %s15 = scalar_lea.sflag [#allocation3], 1
    %16 = vsyncpa %s15, 0
    loop: start=0, step=1, limit=4
    $region2: #{encoder_forward.1} parent=1 // loop_pre_header
      _
    $region3: #{encoder_forward.1} parent=1 // loop_header
      %s18 = sphi 0, %s22
      %p19 = scmp.ge.s32.totalorder %s18, 4
      %s28 = sphi 0, %s30
      %s31 = sphi 0, %s28
      %s32 = sphi 0, %s31
      %s48 = sphi 0, %s32
      %s52 = sphi 0, %s52
      %s54 = sphi 0, %s52
      %s55 = sphi 0, %s54
      %s69 = sphi 0, %s55
      %s73 = sphi 0, %s73
      %s75 = sphi 0, %s73
      %s76 = sphi 0, %s75
      %s90 = sphi 0, %s76
      %s94 = sphi 0, %s94
      %s96 = sphi 0, %s94
      %s97 = sphi 0, %s96
      %s111 = sphi 0, %s97
      %s115 = sphi 0, %s115
      %s117 = sphi 0, %s115
      %s118 = sphi 0, %s117
      %s132 = sphi 0, %s118
      %s136 = sphi 0, %s136
      %s138 = sphi 0, %s136
      %s139 = sphi 0, %s138
      %s153 = sphi 0, %s139
      %s157 = sphi 0, %s157
      %s159 = sphi 0, %s157
      %s160 = sphi 0, %s159
      %s174 = sphi 0, %s160
      %s178 = sphi 0, %s178
      %s180 = sphi 0, %s178
      %s181 = sphi 0, %s180
      %s195 = sphi 0, %s181
      %s199 = sphi 0, %s199
      %s201 = sphi 0, %s199
      %s202 = sphi 0, %s201
      %s216 = sphi 0, %s202
      %s222 = sphi 0, %s224
      %s225 = sphi 0, %s222
      %s226 = sphi 0, %s225
      %s242 = sphi 0, %s226
    $region4: #{encoder_forward.1} parent=1 // loop_header_branch
      %21 = sbr.rel (%p19) target = $region8
    $region5: #{encoder_forward.1} parent=1 // loop_body
      %s23 = ssub.s32 %s18, 1
      %s24 = ssub.s32 %s18, 2
      %s25 = sadd.s32 %s18, 1
      %s26 = ssub.s32 %s18, %s25
      %p27 = scmp.eq.s32.totalorder %s26, 0
      %s29 = sadd.s32 %s28, 1
      %s30 = scalar_select %p27, %s28, %s29
      %p33 = pneg %p27
      %p34 = scmp.eq.s32.totalorder %s18, 1
      %p35 = por %p33, %p34
      %p36 = scmp.ne.s32.totalorder %s28, %s31
      %p37 = scmp.eq.s32.totalorder %s18, 0
      %p38 = por %p36, %p37
      %p39 = scmp.ne.s32.totalorder %s28, %s31
      %p40 = scmp.eq.s32.totalorder %s23, 1
      %p41 = por %p39, %p40
      %p42 = scmp.ne.s32.totalorder %s31, %s32
      %p43 = scmp.eq.s32.totalorder %s23, 0
      %p44 = por %p42, %p43
      %p45 = scmp.ne.s32.totalorder %s31, %s32
      %p46 = scmp.eq.s32.totalorder %s24, 1
      %p47 = por %p45, %p46
      %p49 = scmp.ne.s32.totalorder %s32, %s48
      %p50 = scmp.eq.s32.totalorder %s24, 0
      %p51 = por %p49, %p50
      %s53 = sadd.s32 %s52, 1
      %p56 = scmp.eq.s32.totalorder %s18, 1
      %p57 = scmp.ne.s32.totalorder %s52, %s54
      %p58 = scmp.eq.s32.totalorder %s18, 0
      %p59 = por %p57, %p58
      %p60 = scmp.ne.s32.totalorder %s52, %s54
      %p61 = scmp.eq.s32.totalorder %s23, 1
      %p62 = por %p60, %p61
      %p63 = scmp.ne.s32.totalorder %s54, %s55
      %p64 = scmp.eq.s32.totalorder %s23, 0
      %p65 = por %p63, %p64
      %p66 = scmp.ne.s32.totalorder %s54, %s55
      %p67 = scmp.eq.s32.totalorder %s24, 1
      %p68 = por %p66, %p67
      %p70 = scmp.ne.s32.totalorder %s55, %s69
      %p71 = scmp.eq.s32.totalorder %s24, 0
      %p72 = por %p70, %p71
      %s74 = sadd.s32 %s73, 1
      %p77 = scmp.eq.s32.totalorder %s18, 1
      %p78 = scmp.ne.s32.totalorder %s73, %s75
      %p79 = scmp.eq.s32.totalorder %s18, 0
      %p80 = por %p78, %p79
      %p81 = scmp.ne.s32.totalorder %s73, %s75
      %p82 = scmp.eq.s32.totalorder %s23, 1
      %p83 = por %p81, %p82
      %p84 = scmp.ne.s32.totalorder %s75, %s76
      %p85 = scmp.eq.s32.totalorder %s23, 0
      %p86 = por %p84, %p85
      %p87 = scmp.ne.s32.totalorder %s75, %s76
      %p88 = scmp.eq.s32.totalorder %s24, 1
      %p89 = por %p87, %p88
      %p91 = scmp.ne.s32.totalorder %s76, %s90
      %p92 = scmp.eq.s32.totalorder %s24, 0
      %p93 = por %p91, %p92
      %s95 = sadd.s32 %s94, 1
      %p98 = scmp.eq.s32.totalorder %s18, 1
      %p99 = scmp.ne.s32.totalorder %s94, %s96
      %p100 = scmp.eq.s32.totalorder %s18, 0
      %p101 = por %p99, %p100
      %p102 = scmp.ne.s32.totalorder %s94, %s96
      %p103 = scmp.eq.s32.totalorder %s23, 1
      %p104 = por %p102, %p103
      %p105 = scmp.ne.s32.totalorder %s96, %s97
      %p106 = scmp.eq.s32.totalorder %s23, 0
      %p107 = por %p105, %p106
      %p108 = scmp.ne.s32.totalorder %s96, %s97
      %p109 = scmp.eq.s32.totalorder %s24, 1
      %p110 = por %p108, %p109
      %p112 = scmp.ne.s32.totalorder %s97, %s111
      %p113 = scmp.eq.s32.totalorder %s24, 0
      %p114 = por %p112, %p113
      %s116 = sadd.s32 %s115, 1
      %p119 = scmp.eq.s32.totalorder %s18, 1
      %p120 = scmp.ne.s32.totalorder %s115, %s117
      %p121 = scmp.eq.s32.totalorder %s18, 0
      %p122 = por %p120, %p121
      %p123 = scmp.ne.s32.totalorder %s115, %s117
      %p124 = scmp.eq.s32.totalorder %s23, 1
      %p125 = por %p123, %p124
      %p126 = scmp.ne.s32.totalorder %s117, %s118
      %p127 = scmp.eq.s32.totalorder %s23, 0
      %p128 = por %p126, %p127
      %p129 = scmp.ne.s32.totalorder %s117, %s118
      %p130 = scmp.eq.s32.totalorder %s24, 1
      %p131 = por %p129, %p130
      %p133 = scmp.ne.s32.totalorder %s118, %s132
      %p134 = scmp.eq.s32.totalorder %s24, 0
      %p135 = por %p133, %p134
      %s137 = sadd.s32 %s136, 1
      %p140 = scmp.eq.s32.totalorder %s18, 1
      %p141 = scmp.ne.s32.totalorder %s136, %s138
      %p142 = scmp.eq.s32.totalorder %s18, 0
      %p143 = por %p141, %p142
      %p144 = scmp.ne.s32.totalorder %s136, %s138
      %p145 = scmp.eq.s32.totalorder %s23, 1
      %p146 = por %p144, %p145
      %p147 = scmp.ne.s32.totalorder %s138, %s139
      %p148 = scmp.eq.s32.totalorder %s23, 0
      %p149 = por %p147, %p148
      %p150 = scmp.ne.s32.totalorder %s138, %s139
      %p151 = scmp.eq.s32.totalorder %s24, 1
      %p152 = por %p150, %p151
      %p154 = scmp.ne.s32.totalorder %s139, %s153
      %p155 = scmp.eq.s32.totalorder %s24, 0
      %p156 = por %p154, %p155
      %s158 = sadd.s32 %s157, 1
      %p161 = scmp.eq.s32.totalorder %s18, 1
      %p162 = scmp.ne.s32.totalorder %s157, %s159
      %p163 = scmp.eq.s32.totalorder %s18, 0
      %p164 = por %p162, %p163
      %p165 = scmp.ne.s32.totalorder %s157, %s159
      %p166 = scmp.eq.s32.totalorder %s23, 1
      %p167 = por %p165, %p166
      %p168 = scmp.ne.s32.totalorder %s159, %s160
      %p169 = scmp.eq.s32.totalorder %s23, 0
      %p170 = por %p168, %p169
      %p171 = scmp.ne.s32.totalorder %s159, %s160
      %p172 = scmp.eq.s32.totalorder %s24, 1
      %p173 = por %p171, %p172
      %p175 = scmp.ne.s32.totalorder %s160, %s174
      %p176 = scmp.eq.s32.totalorder %s24, 0
      %p177 = por %p175, %p176
      %s179 = sadd.s32 %s178, 1
      %p182 = scmp.eq.s32.totalorder %s18, 1
      %p183 = scmp.ne.s32.totalorder %s178, %s180
      %p184 = scmp.eq.s32.totalorder %s18, 0
      %p185 = por %p183, %p184
      %p186 = scmp.ne.s32.totalorder %s178, %s180
      %p187 = scmp.eq.s32.totalorder %s23, 1
      %p188 = por %p186, %p187
      %p189 = scmp.ne.s32.totalorder %s180, %s181
      %p190 = scmp.eq.s32.totalorder %s23, 0
      %p191 = por %p189, %p190
      %p192 = scmp.ne.s32.totalorder %s180, %s181
      %p193 = scmp.eq.s32.totalorder %s24, 1
      %p194 = por %p192, %p193
      %p196 = scmp.ne.s32.totalorder %s181, %s195
      %p197 = scmp.eq.s32.totalorder %s24, 0
      %p198 = por %p196, %p197
      %s200 = sadd.s32 %s199, 1
      %p203 = scmp.eq.s32.totalorder %s18, 1
      %p204 = scmp.ne.s32.totalorder %s199, %s201
      %p205 = scmp.eq.s32.totalorder %s18, 0
      %p206 = por %p204, %p205
      %p207 = scmp.ne.s32.totalorder %s199, %s201
      %p208 = scmp.eq.s32.totalorder %s23, 1
      %p209 = por %p207, %p208
      %p210 = scmp.ne.s32.totalorder %s201, %s202
      %p211 = scmp.eq.s32.totalorder %s23, 0
      %p212 = por %p210, %p211
      %p213 = scmp.ne.s32.totalorder %s201, %s202
      %p214 = scmp.eq.s32.totalorder %s24, 1
      %p215 = por %p213, %p214
      %p217 = scmp.ne.s32.totalorder %s202, %s216
      %p218 = scmp.eq.s32.totalorder %s24, 0
      %p219 = por %p217, %p218
      %s220 = ssub.s32 %s18, %s25
      %p221 = scmp.eq.s32.totalorder %s220, 0
      %s223 = sadd.s32 %s222, 1
      %s224 = scalar_select %p221, %s222, %s223
      %p227 = pneg %p221
      %p228 = scmp.eq.s32.totalorder %s18, 1
      %p229 = por %p227, %p228
      %p230 = scmp.ne.s32.totalorder %s222, %s225
      %p231 = scmp.eq.s32.totalorder %s18, 0
      %p232 = por %p230, %p231
      %p233 = scmp.ne.s32.totalorder %s222, %s225
      %p234 = scmp.eq.s32.totalorder %s23, 1
      %p235 = por %p233, %p234
      %p236 = scmp.ne.s32.totalorder %s225, %s226
      %p237 = scmp.eq.s32.totalorder %s23, 0
      %p238 = por %p236, %p237
      %p239 = scmp.ne.s32.totalorder %s225, %s226
      %p240 = scmp.eq.s32.totalorder %s24, 1
      %p241 = por %p239, %p240
      %p243 = scmp.ne.s32.totalorder %s226, %s242
      %p244 = scmp.eq.s32.totalorder %s24, 0
      %p245 = por %p243, %p244
      %p246 = scmp.le.s32.totalorder 1, %s18
      %p247 = scmp.lt.s32.totalorder %s18, 3
      %p248 = pnand %p246, %p247
      %p249 = pneg %p248
      // Predicated region
      $region9: #{encoder_forward.1} parent=5 // pred_check
        _
      $region10: #{encoder_forward.1} parent=5 // pred_check_branch
        %251 = sbr.rel (%p248) target = $region12
      $region11: #{encoder_forward.1} parent=5 // pred_region
        %s252 = ssub.s32 %s18, 1
        // Predicated region
        $region13: #{encoder_forward.1} parent=11 // pred_check
          %p253 = pneg %p65
        $region14: #{encoder_forward.1} parent=11 // pred_check_branch
          %255 = sbr.rel (%p253) target = $region16
        $region15: #{encoder_forward.1} parent=11 // pred_region
          _
        $region16: #{encoder_forward.1} parent=11 // pred_fallthru
          _
        // Predicated region
        $region17: #{encoder_forward.1} parent=11 // pred_check
          %p256 = pneg %p86
        $region18: #{encoder_forward.1} parent=11 // pred_check_branch
          %258 = sbr.rel (%p256) target = $region20
        $region19: #{encoder_forward.1} parent=11 // pred_region
          _
        $region20: #{encoder_forward.1} parent=11 // pred_fallthru
          _
        // Predicated region
        $region21: #{encoder_forward.1} parent=11 // pred_check
          %p259 = pneg %p107
        $region22: #{encoder_forward.1} parent=11 // pred_check_branch
          %261 = sbr.rel (%p259) target = $region24
        $region23: #{encoder_forward.1} parent=11 // pred_region
          _
        $region24: #{encoder_forward.1} parent=11 // pred_fallthru
          _
        // Predicated region
        $region25: #{encoder_forward.1} parent=11 // pred_check
          %p262 = pneg %p128
        $region26: #{encoder_forward.1} parent=11 // pred_check_branch
          %264 = sbr.rel (%p262) target = $region28
        $region27: #{encoder_forward.1} parent=11 // pred_region
          _
        $region28: #{encoder_forward.1} parent=11 // pred_fallthru
          _
        // Predicated region
        $region29: #{encoder_forward.1} parent=11 // pred_check
          %p265 = pneg %p149
        $region30: #{encoder_forward.1} parent=11 // pred_check_branch
          %267 = sbr.rel (%p265) target = $region32
        $region31: #{encoder_forward.1} parent=11 // pred_region
          _
        $region32: #{encoder_forward.1} parent=11 // pred_fallthru
          _
        // Predicated region
        $region33: #{encoder_forward.1} parent=11 // pred_check
          %p268 = pneg %p170
        $region34: #{encoder_forward.1} parent=11 // pred_check_branch
          %270 = sbr.rel (%p268) target = $region36
        $region35: #{encoder_forward.1} parent=11 // pred_region
          _
        $region36: #{encoder_forward.1} parent=11 // pred_fallthru
          _
        // Predicated region
        $region37: #{encoder_forward.1} parent=11 // pred_check
          %p271 = pneg %p191
        $region38: #{encoder_forward.1} parent=11 // pred_check_branch
          %273 = sbr.rel (%p271) target = $region40
        $region39: #{encoder_forward.1} parent=11 // pred_region
          _
        $region40: #{encoder_forward.1} parent=11 // pred_fallthru
          _
        // Predicated region
        $region41: #{encoder_forward.1} parent=11 // pred_check
          %p274 = pneg %p212
        $region42: #{encoder_forward.1} parent=11 // pred_check_branch
          %276 = sbr.rel (%p274) target = $region44
        $region43: #{encoder_forward.1} parent=11 // pred_region
          _
        $region44: #{encoder_forward.1} parent=11 // pred_fallthru
          _
      $region12: #{encoder_forward.1} parent=5 // pred_fallthru
        _
      %p277 = scmp.lt.s32.totalorder %s18, 2
      // Predicated region
      $region45: #{encoder_forward.1} parent=5 // pred_check
        %p278 = pneg %p277
      $region46: #{encoder_forward.1} parent=5 // pred_check_branch
        %280 = sbr.rel (%p278) target = $region48
      $region47: #{encoder_forward.1} parent=5 // pred_region
        // Predicated region
        $region49: #{encoder_forward.1} parent=47 // pred_check
          %p281 = pneg %p38
        $region50: #{encoder_forward.1} parent=47 // pred_check_branch
          %283 = sbr.rel (%p281) target = $region52
        $region51: #{encoder_forward.1} parent=47 // pred_region
          %s284 = smul.u32 2, %s18
          %p285 = scmp.lt.s32.totalorder %s284, 3
          %s286 = scalar_select %p285, %s284, 3
          %s287 = smul.addr %s286, 4
          %s288 = scalar_lea.vmem %s0, %s287
          %s289 = smul.u32 2, %s18
        $region52: #{encoder_forward.1} parent=47 // pred_fallthru
          _
      $region48: #{encoder_forward.1} parent=5 // pred_fallthru
        _
      %p290 = scmp.le.s32.totalorder 1, %s18
      %p291 = scmp.lt.s32.totalorder %s18, 3
      %p292 = pnand %p290, %p291
      %p293 = pneg %p292
      // Predicated region
      $region53: #{encoder_forward.1} parent=5 // pred_check
        _
      $region54: #{encoder_forward.1} parent=5 // pred_check_branch
        %295 = sbr.rel (%p292) target = $region56
      $region55: #{encoder_forward.1} parent=5 // pred_region
        %s296 = ssub.s32 %s18, 1
        %s297 = smul.u32 2, %s23
        %p298 = scmp.lt.s32.totalorder %s297, 3
        %s299 = scalar_select %p298, %s297, 3
        %s300 = smul.addr %s299, 4
        %s301 = scalar_lea.vmem %s0, %s300
        %p302 = pneg %p44
        %p303 = pneg %p41
        %p304 = pneg %p65
        %p305 = pneg %p62
        %p306 = pneg %p86
        %p307 = pneg %p83
        %p308 = pneg %p107
        %p309 = pneg %p104
        %p310 = pneg %p128
        %p311 = pneg %p125
        %p312 = pneg %p149
        %p313 = pneg %p146
        %p314 = pneg %p170
        %p315 = pneg %p167
        %p316 = pneg %p191
        %p317 = pneg %p188
        %p318 = pneg %p212
        %p319 = pneg %p209
        %p320 = pneg %p238
        %p321 = pneg %p235
        %s322 = sand.u32 %s225, 1
        %s323 = scalar_lea.sflag [#allocation3], %s322
        %s324 = sand.u32 %s225, 1
        %s325 = smul.addr %s324, 32
        %s326 = scalar_lea.vmem [#allocation2], %s325
        %s327 = smul.u32 2, %s23
        %p328 = scmp.lt.s32.totalorder %s327, 3
        %s329 = scalar_select %p328, %s327, 3
        %s330 = smul.addr %s329, 4
        %s331 = scalar_lea.vmem %s0, %s330
        %s332 = smul.u32 2, %s23
        %s333 = smul.u32 2, %s23
        %v335 = vld [vmem:[%s331] sm:$0xf]
        %v336 = vld [vmem:[%s331 + $0x4] sm:$0xf]
        %v337 = vld [vmem:[%s1] sm:$0xff]
        %v338 = vld [vmem:[%s1 + $0x8] sm:$0xff]
        %v339 = vld [vmem:[%s2] sm:$0xff]
        %v340 = vld [vmem:[%s2 + $0x8] sm:$0xff]
        %v341 = vld [vmem:[%s2 + $0x10] sm:$0xff]
        %v342 = vld [vmem:[%s2 + $0x18] sm:$0xff]
        %v343 = vld [vmem:[%s2 + $0x20] sm:$0xff]
        %v344 = vld [vmem:[%s2 + $0x28] sm:$0xff]
        %v347 = vunpack.c.l.b16 %v335
        %v348 = vunpack.c.l.b16 %v336
        %v349 = vpack.c.b16 %v348, %v347
        %v356 = vunpack.c.l.b16 %v339
        %v357 = vunpack.c.h.b16 %v339
        %v358 = vunpack.c.l.b16 %v340
        %v359 = vunpack.c.h.b16 %v340
        %v360 = vunpack.c.l.b16 %v341
        %v361 = vunpack.c.h.b16 %v341
        %v362 = vunpack.c.l.b16 %v342
        %v363 = vunpack.c.h.b16 %v342
        %v364 = vunpack.c.l.b16 %v343
        %v365 = vunpack.c.h.b16 %v343
        %v366 = vunpack.c.l.b16 %v344
        %v367 = vunpack.c.h.b16 %v344
        %v368 = vpack.c.b16 %v362, %v356
        %v369 = vpack.c.b16 %v363, %v357
        %v370 = vpack.c.b16 %v364, %v358
        %v371 = vpack.c.b16 %v365, %v359
        %v372 = vpack.c.b16 %v366, %v360
        %v373 = vpack.c.b16 %v367, %v361
        %vm380 = vcmask 130048
        %v382 = vsel %vm380, %v349, 0
        %384 = vmatprep.subr.bf16.mxu0 %v369
        %385 = vmatpush1.bf16.msra.mxu0 %v368
        %386 = vmatprep.subr.bf16.mxu0 0
        %387 = vmatpush1.bf16.msra.mxu0 0
        %388 = vmatprep.subr.bf16.mxu0 0
        %389 = vmatpush1.bf16.msra.mxu0 0
        %390 = vmatprep.subr.bf16.mxu0 0
        %391 = vmatpush1.bf16.msra.mxu0 0
        %392 = vmatprep.subr.bf16.mxu0 0
        %393 = vmatpush1.bf16.msra.mxu0 0
        %394 = vmatprep.subr.bf16.mxu0 0
        %395 = vmatpush1.bf16.msra.mxu0 0
        %396 = vmatprep.subr.bf16.mxu0 0
        %397 = vmatpush1.bf16.msra.mxu0 0
        %398 = vmatprep.subr.bf16.mxu0 0
        %399 = vmatpush1.bf16.msra.mxu0 0
        %400 = vmatprep.subr.bf16.mxu0 0
        %401 = vmatpush1.bf16.msra.mxu0 0
        %402 = vmatprep.subr.bf16.mxu0 0
        %403 = vmatpush1.bf16.msra.mxu0 0
        %404 = vmatprep.subr.bf16.mxu0 0
        %405 = vmatpush1.bf16.msra.mxu0 0
        %406 = vmatprep.subr.bf16.mxu0 0
        %407 = vmatpush1.bf16.msra.mxu0 0
        %408 = vmatprep.subr.bf16.mxu0 0
        %409 = vmatpush1.bf16.msra.mxu0 0
        %410 = vmatprep.subr.bf16.mxu0 0
        %411 = vmatpush1.bf16.msra.mxu0 0
        %412 = vmatprep.subr.bf16.mxu0 0
        %413 = vmatpush1.bf16.msra.mxu0 0
        %414 = vmatprep.subr.bf16.mxu0 0
        %415 = vmatpush1.bf16.msra.mxu0 0
        %416 = vmatprep.mubr.bf16.mxu0 0
        %417 = vmatmul.mubr.bf16.gmra.mrb[0].mxu0 %v382
        %v418 = vpop.f32.mrb[0].mxu0
        %v419 = vadd.f32 0.0, %v418
        %v420 = vpop.f32.mrb[0].mxu0
        %v421 = vadd.f32 0.0, %v420
        %v422 = vpop.f32.mrb[0].mxu0
        %v423 = vadd.f32 0.0, %v422
        %v424 = vpop.f32.mrb[0].mxu0
        %v425 = vadd.f32 0.0, %v424
        %426 = vdwg.mxu0
        %427 = vmatprep.subr.bf16.mxu0 %v371
        %428 = vmatpush1.bf16.msra.mxu0 %v370
        %429 = vmatprep.subr.bf16.mxu0 0
        %430 = vmatpush1.bf16.msra.mxu0 0
        %431 = vmatprep.subr.bf16.mxu0 0
        %432 = vmatpush1.bf16.msra.mxu0 0
        %433 = vmatprep.subr.bf16.mxu0 0
        %434 = vmatpush1.bf16.msra.mxu0 0
        %435 = vmatprep.subr.bf16.mxu0 0
        %436 = vmatpush1.bf16.msra.mxu0 0
        %437 = vmatprep.subr.bf16.mxu0 0
        %438 = vmatpush1.bf16.msra.mxu0 0
        %439 = vmatprep.subr.bf16.mxu0 0
        %440 = vmatpush1.bf16.msra.mxu0 0
        %441 = vmatprep.subr.bf16.mxu0 0
        %442 = vmatpush1.bf16.msra.mxu0 0
        %443 = vmatprep.subr.bf16.mxu0 0
        %444 = vmatpush1.bf16.msra.mxu0 0
        %445 = vmatprep.subr.bf16.mxu0 0
        %446 = vmatpush1.bf16.msra.mxu0 0
        %447 = vmatprep.subr.bf16.mxu0 0
        %448 = vmatpush1.bf16.msra.mxu0 0
        %449 = vmatprep.subr.bf16.mxu0 0
        %450 = vmatpush1.bf16.msra.mxu0 0
        %451 = vmatprep.subr.bf16.mxu0 0
        %452 = vmatpush1.bf16.msra.mxu0 0
        %453 = vmatprep.subr.bf16.mxu0 0
        %454 = vmatpush1.bf16.msra.mxu0 0
        %455 = vmatprep.subr.bf16.mxu0 0
        %456 = vmatpush1.bf16.msra.mxu0 0
        %457 = vmatprep.subr.bf16.mxu0 0
        %458 = vmatpush1.bf16.msra.mxu0 0
        %459 = vmatprep.mubr.bf16.mxu0 0
        %460 = vmatmul.mubr.bf16.gmra.mrb[0].mxu0 %v382
        %v461 = vpop.f32.mrb[0].mxu0
        %v462 = vadd.f32 0.0, %v461
        %v463 = vpop.f32.mrb[0].mxu0
        %v464 = vadd.f32 0.0, %v463
        %v465 = vpop.f32.mrb[0].mxu0
        %v466 = vadd.f32 0.0, %v465
        %v467 = vpop.f32.mrb[0].mxu0
        %v468 = vadd.f32 0.0, %v467
        %469 = vdwg.mxu0
        %470 = vmatprep.subr.bf16.mxu0 %v373
        %471 = vmatpush1.bf16.msra.mxu0 %v372
        %472 = vmatprep.subr.bf16.mxu0 0
        %473 = vmatpush1.bf16.msra.mxu0 0
        %474 = vmatprep.subr.bf16.mxu0 0
        %475 = vmatpush1.bf16.msra.mxu0 0
        %476 = vmatprep.subr.bf16.mxu0 0
        %477 = vmatpush1.bf16.msra.mxu0 0
        %478 = vmatprep.subr.bf16.mxu0 0
        %479 = vmatpush1.bf16.msra.mxu0 0
        %480 = vmatprep.subr.bf16.mxu0 0
        %481 = vmatpush1.bf16.msra.mxu0 0
        %482 = vmatprep.subr.bf16.mxu0 0
        %483 = vmatpush1.bf16.msra.mxu0 0
        %484 = vmatprep.subr.bf16.mxu0 0
        %485 = vmatpush1.bf16.msra.mxu0 0
        %486 = vmatprep.subr.bf16.mxu0 0
        %487 = vmatpush1.bf16.msra.mxu0 0
        %488 = vmatprep.subr.bf16.mxu0 0
        %489 = vmatpush1.bf16.msra.mxu0 0
        %490 = vmatprep.subr.bf16.mxu0 0
        %491 = vmatpush1.bf16.msra.mxu0 0
        %492 = vmatprep.subr.bf16.mxu0 0
        %493 = vmatpush1.bf16.msra.mxu0 0
        %494 = vmatprep.subr.bf16.mxu0 0
        %495 = vmatpush1.bf16.msra.mxu0 0
        %496 = vmatprep.subr.bf16.mxu0 0
        %497 = vmatpush1.bf16.msra.mxu0 0
        %498 = vmatprep.subr.bf16.mxu0 0
        %499 = vmatpush1.bf16.msra.mxu0 0
        %500 = vmatprep.subr.bf16.mxu0 0
        %501 = vmatpush1.bf16.msra.mxu0 0
        %502 = vmatprep.mubr.bf16.mxu0 0
        %503 = vmatmul.mubr.bf16.gmra.mrb[0].mxu0 %v382
        %v504 = vpop.f32.mrb[0].mxu0
        %v505 = vadd.f32 0.0, %v504
        %v506 = vpop.f32.mrb[0].mxu0
        %v507 = vadd.f32 0.0, %v506
        %v508 = vpop.f32.mrb[0].mxu0
        %v509 = vadd.f32 0.0, %v508
        %v510 = vpop.f32.mrb[0].mxu0
        %v511 = vadd.f32 0.0, %v510
        %512 = vdwg.mxu0
        %v513 = vpack.c.bf16 %v423, %v419
        %v514 = vpack.c.bf16 %v425, %v421
        %v515 = vpack.c.bf16 %v466, %v462
        %v516 = vpack.c.bf16 %v468, %v464
        %v517 = vpack.c.bf16 %v509, %v505
        %v518 = vpack.c.bf16 %v511, %v507
        %vm519 = vcmask 523264
        %v521 = vsel %vm519, %v513, 0
        %v524 = vsel %vm519, %v515, 0
        %526 = vmatprep.subr.bf16.mxu0 0
        %527 = vmatpush1.bf16.xpose.msra.mxu0 %v524
        %528 = vmatprep.subr.bf16.mxu0 0
        %529 = vmatpush1.bf16.xpose.msra.mxu0 0
        %530 = vmatprep.subr.bf16.mxu0 0
        %531 = vmatpush1.bf16.xpose.msra.mxu0 0
        %532 = vmatprep.subr.bf16.mxu0 0
        %533 = vmatpush1.bf16.xpose.msra.mxu0 0
        %534 = vmatprep.subr.bf16.mxu0 0
        %535 = vmatpush1.bf16.xpose.msra.mxu0 0
        %536 = vmatprep.subr.bf16.mxu0 0
        %537 = vmatpush1.bf16.xpose.msra.mxu0 0
        %538 = vmatprep.subr.bf16.mxu0 0
        %539 = vmatpush1.bf16.xpose.msra.mxu0 0
        %540 = vmatprep.subr.bf16.mxu0 0
        %541 = vmatpush1.bf16.xpose.msra.mxu0 0
        %542 = vmatprep.subr.bf16.mxu0 0
        %543 = vmatpush1.bf16.xpose.msra.mxu0 0
        %544 = vmatprep.subr.bf16.mxu0 0
        %545 = vmatpush1.bf16.xpose.msra.mxu0 0
        %546 = vmatprep.subr.bf16.mxu0 0
        %547 = vmatpush1.bf16.xpose.msra.mxu0 0
        %548 = vmatprep.subr.bf16.mxu0 0
        %549 = vmatpush1.bf16.xpose.msra.mxu0 0
        %550 = vmatprep.subr.bf16.mxu0 0
        %551 = vmatpush1.bf16.xpose.msra.mxu0 0
        %552 = vmatprep.subr.bf16.mxu0 0
        %553 = vmatpush1.bf16.xpose.msra.mxu0 0
        %554 = vmatprep.subr.bf16.mxu0 0
        %555 = vmatpush1.bf16.xpose.msra.mxu0 0
        %556 = vmatprep.subr.bf16.mxu0 0
        %557 = vmatpush1.bf16.xpose.msra.mxu0 0
        %558 = vmatprep.mubr.bf16.mxu0 0
        %559 = vmatmul.mubr.bf16.gmra.mrb[0].mxu0 %v521
        %v560 = vpop.f32.mrb[0].mxu0
        %v561 = vadd.f32 0.0, %v560
        %v562 = vpop.f32.mrb[0].mxu0
        %v563 = vpop.f32.mrb[0].mxu0
        %v564 = vadd.f32 0.0, %v563
        %v565 = vpop.f32.mrb[0].mxu0
        %566 = vdwg.mxu0
        %v567 = vmul.f32 %v561, 0.125
        %v568 = vmul.f32 %v564, 0.125
        %v569 = vsel %vm380, %v567, -inf
        %570 = vmax.xlane.f32.xlu0 %v569
        %v571 = vpop.xlane.xlu0 %570
        %v572 = vsel %vm380, %v568, -inf
        %573 = vmax.xlane.f32.xlu0 %v572
        %v574 = vpop.xlane.xlu0 %573
        %v575 = vsub.f32 %v567, %v571
        %v576 = vsub.f32 %v568, %v574
        %v577 = vmul.f32 %v575, 1.442695
        %v578 = vpow.pop %v577
        %v579 = vmul.f32 %v576, 1.442695
        %v580 = vpow.pop %v579
        %v581 = vsel %vm380, %v578, 0.0
        %582 = vadd.xlane.f32.xlu0 %v581
        %v583 = vpop.xlane.xlu0 %582
        %v584 = vsel %vm380, %v580, 0.0
        %585 = vadd.xlane.f32.xlu0 %v584
        %v586 = vpop.xlane.xlu0 %585
        %v587 = vrcp.pop %v583
        %v588 = vrcp.pop %v586
        %v589 = vmul.f32 %v578, %v587
        %v590 = vmul.f32 %v580, %v588
        %v591 = vpack.c.bf16 %v590, %v589
        %v593 = vsel %vm380, %v591, 0
        %595 = vmatprep.subr.bf16.mxu0 0
        %596 = vmatpush1.bf16.msra.mxu0 %v517
        %597 = vmatprep.subr.bf16.mxu0 0
        %598 = vmatpush1.bf16.msra.mxu0 0
        %599 = vmatprep.subr.bf16.mxu0 0
        %600 = vmatpush1.bf16.msra.mxu0 0
        %601 = vmatprep.subr.bf16.mxu0 0
        %602 = vmatpush1.bf16.msra.mxu0 0
        %603 = vmatprep.subr.bf16.mxu0 0
        %604 = vmatpush1.bf16.msra.mxu0 0
        %605 = vmatprep.subr.bf16.mxu0 0
        %606 = vmatpush1.bf16.msra.mxu0 0
        %607 = vmatprep.subr.bf16.mxu0 0
        %608 = vmatpush1.bf16.msra.mxu0 0
        %609 = vmatprep.subr.bf16.mxu0 0
        %610 = vmatpush1.bf16.msra.mxu0 0
        %611 = vmatprep.subr.bf16.mxu0 0
        %612 = vmatpush1.bf16.msra.mxu0 0
        %613 = vmatprep.subr.bf16.mxu0 0
        %614 = vmatpush1.bf16.msra.mxu0 0
        %615 = vmatprep.subr.bf16.mxu0 0
        %616 = vmatpush1.bf16.msra.mxu0 0
        %617 = vmatprep.subr.bf16.mxu0 0
        %618 = vmatpush1.bf16.msra.mxu0 0
        %619 = vmatprep.subr.bf16.mxu0 0
        %620 = vmatpush1.bf16.msra.mxu0 0
        %621 = vmatprep.subr.bf16.mxu0 0
        %622 = vmatpush1.bf16.msra.mxu0 0
        %623 = vmatprep.subr.bf16.mxu0 0
        %624 = vmatpush1.bf16.msra.mxu0 0
        %625 = vmatprep.subr.bf16.mxu0 0
        %626 = vmatpush1.bf16.msra.mxu0 0
        %627 = vmatprep.mubr.bf16.mxu0 0
        %628 = vmatmul.mubr.bf16.gmra.mrb[0].mxu0 %v593
        %v629 = vpop.f32.mrb[0].mxu0
        %v630 = vadd.f32 0.0, %v629
        %v631 = vpop.f32.mrb[0].mxu0
        %v632 = vpop.f32.mrb[0].mxu0
        %v633 = vadd.f32 0.0, %v632
        %v634 = vpop.f32.mrb[0].mxu0
        %635 = vdwg.mxu0
        %637 = vrot.lane.b32.xlu0 %v513, 64
        %v638 = vpop.permute.xlu0 %637
        %640 = vrot.lane.b32.xlu0 %v515, 64
        %v641 = vpop.permute.xlu0 %640
        %v643 = vsel %vm519, %v638, 0
        %v646 = vsel %vm519, %v641, 0
        %648 = vmatprep.subr.bf16.mxu0 0
        %649 = vmatpush1.bf16.xpose.msra.mxu0 %v646
        %650 = vmatprep.subr.bf16.mxu0 0
        %651 = vmatpush1.bf16.xpose.msra.mxu0 0
        %652 = vmatprep.subr.bf16.mxu0 0
        %653 = vmatpush1.bf16.xpose.msra.mxu0 0
        %654 = vmatprep.subr.bf16.mxu0 0
        %655 = vmatpush1.bf16.xpose.msra.mxu0 0
        %656 = vmatprep.subr.bf16.mxu0 0
        %657 = vmatpush1.bf16.xpose.msra.mxu0 0
        %658 = vmatprep.subr.bf16.mxu0 0
        %659 = vmatpush1.bf16.xpose.msra.mxu0 0
        %660 = vmatprep.subr.bf16.mxu0 0
        %661 = vmatpush1.bf16.xpose.msra.mxu0 0
        %662 = vmatprep.subr.bf16.mxu0 0
        %663 = vmatpush1.bf16.xpose.msra.mxu0 0
        %664 = vmatprep.subr.bf16.mxu0 0
        %665 = vmatpush1.bf16.xpose.msra.mxu0 0
        %666 = vmatprep.subr.bf16.mxu0 0
        %667 = vmatpush1.bf16.xpose.msra.mxu0 0
        %668 = vmatprep.subr.bf16.mxu0 0
        %669 = vmatpush1.bf16.xpose.msra.mxu0 0
        %670 = vmatprep.subr.bf16.mxu0 0
        %671 = vmatpush1.bf16.xpose.msra.mxu0 0
        %672 = vmatprep.subr.bf16.mxu0 0
        %673 = vmatpush1.bf16.xpose.msra.mxu0 0
        %674 = vmatprep.subr.bf16.mxu0 0
        %675 = vmatpush1.bf16.xpose.msra.mxu0 0
        %676 = vmatprep.subr.bf16.mxu0 0
        %677 = vmatpush1.bf16.xpose.msra.mxu0 0
        %678 = vmatprep.subr.bf16.mxu0 0
        %679 = vmatpush1.bf16.xpose.msra.mxu0 0
        %680 = vmatprep.mubr.bf16.mxu0 0
        %681 = vmatmul.mubr.bf16.gmra.mrb[0].mxu0 %v643
        %v682 = vpop.f32.mrb[0].mxu0
        %v683 = vadd.f32 0.0, %v682
        %v684 = vpop.f32.mrb[0].mxu0
        %v685 = vpop.f32.mrb[0].mxu0
        %v686 = vadd.f32 0.0, %v685
        %v687 = vpop.f32.mrb[0].mxu0
        %688 = vdwg.mxu0
        %v689 = vmul.f32 %v683, 0.125
        %v690 = vmul.f32 %v686, 0.125
        %v691 = vsel %vm380, %v689, -inf
        %692 = vmax.xlane.f32.xlu0 %v691
        %v693 = vpop.xlane.xlu0 %692
        %v694 = vsel %vm380, %v690, -inf
        %695 = vmax.xlane.f32.xlu0 %v694
        %v696 = vpop.xlane.xlu0 %695
        %v697 = vsub.f32 %v689, %v693
        %v698 = vsub.f32 %v690, %v696
        %v699 = vmul.f32 %v697, 1.442695
        %v700 = vpow.pop %v699
        %v701 = vmul.f32 %v698, 1.442695
        %v702 = vpow.pop %v701
        %v703 = vsel %vm380, %v700, 0.0
        %704 = vadd.xlane.f32.xlu0 %v703
        %v705 = vpop.xlane.xlu0 %704
        %v706 = vsel %vm380, %v702, 0.0
        %707 = vadd.xlane.f32.xlu0 %v706
        %v708 = vpop.xlane.xlu0 %707
        %v709 = vrcp.pop %v705
        %v710 = vrcp.pop %v708
        %v711 = vmul.f32 %v700, %v709
        %v712 = vmul.f32 %v702, %v710
        %v713 = vpack.c.bf16 %v712, %v711
        %715 = vrot.lane.b32.xlu0 %v517, 64
        %v716 = vpop.permute.xlu0 %715
        %v719 = vsel %vm380, %v713, 0
        %721 = vmatprep.subr.bf16.mxu0 0
        %722 = vmatpush1.bf16.msra.mxu0 %v716
        %723 = vmatprep.subr.bf16.mxu0 0
        %724 = vmatpush1.bf16.msra.mxu0 0
        %725 = vmatprep.subr.bf16.mxu0 0
        %726 = vmatpush1.bf16.msra.mxu0 0
        %727 = vmatprep.subr.bf16.mxu0 0
        %728 = vmatpush1.bf16.msra.mxu0 0
        %729 = vmatprep.subr.bf16.mxu0 0
        %730 = vmatpush1.bf16.msra.mxu0 0
        %731 = vmatprep.subr.bf16.mxu0 0
        %732 = vmatpush1.bf16.msra.mxu0 0
        %733 = vmatprep.subr.bf16.mxu0 0
        %734 = vmatpush1.bf16.msra.mxu0 0
        %735 = vmatprep.subr.bf16.mxu0 0
        %736 = vmatpush1.bf16.msra.mxu0 0
        %737 = vmatprep.subr.bf16.mxu0 0
        %738 = vmatpush1.bf16.msra.mxu0 0
        %739 = vmatprep.subr.bf16.mxu0 0
        %740 = vmatpush1.bf16.msra.mxu0 0
        %741 = vmatprep.subr.bf16.mxu0 0
        %742 = vmatpush1.bf16.msra.mxu0 0
        %743 = vmatprep.subr.bf16.mxu0 0
        %744 = vmatpush1.bf16.msra.mxu0 0
        %745 = vmatprep.subr.bf16.mxu0 0
        %746 = vmatpush1.bf16.msra.mxu0 0
        %747 = vmatprep.subr.bf16.mxu0 0
        %748 = vmatpush1.bf16.msra.mxu0 0
        %749 = vmatprep.subr.bf16.mxu0 0
        %750 = vmatpush1.bf16.msra.mxu0 0
        %751 = vmatprep.subr.bf16.mxu0 0
        %752 = vmatpush1.bf16.msra.mxu0 0
        %753 = vmatprep.mubr.bf16.mxu0 0
        %754 = vmatmul.mubr.bf16.gmra.mrb[0].mxu0 %v719
        %v755 = vpop.f32.mrb[0].mxu0
        %v756 = vadd.f32 0.0, %v755
        %v757 = vpop.f32.mrb[0].mxu0
        %v758 = vpop.f32.mrb[0].mxu0
        %v759 = vadd.f32 0.0, %v758
        %v760 = vpop.f32.mrb[0].mxu0
        %761 = vdwg.mxu0
        %v763 = vsel %vm519, %v514, 0
        %v766 = vsel %vm519, %v516, 0
        %768 = vmatprep.subr.bf16.mxu0 0
        %769 = vmatpush1.bf16.xpose.msra.mxu0 %v766
        %770 = vmatprep.subr.bf16.mxu0 0
        %771 = vmatpush1.bf16.xpose.msra.mxu0 0
        %772 = vmatprep.subr.bf16.mxu0 0
        %773 = vmatpush1.bf16.xpose.msra.mxu0 0
        %774 = vmatprep.subr.bf16.mxu0 0
        %775 = vmatpush1.bf16.xpose.msra.mxu0 0
        %776 = vmatprep.subr.bf16.mxu0 0
        %777 = vmatpush1.bf16.xpose.msra.mxu0 0
        %778 = vmatprep.subr.bf16.mxu0 0
        %779 = vmatpush1.bf16.xpose.msra.mxu0 0
        %780 = vmatprep.subr.bf16.mxu0 0
        %781 = vmatpush1.bf16.xpose.msra.mxu0 0
        %782 = vmatprep.subr.bf16.mxu0 0
        %783 = vmatpush1.bf16.xpose.msra.mxu0 0
        %784 = vmatprep.subr.bf16.mxu0 0
        %785 = vmatpush1.bf16.xpose.msra.mxu0 0
        %786 = vmatprep.subr.bf16.mxu0 0
        %787 = vmatpush1.bf16.xpose.msra.mxu0 0
        %788 = vmatprep.subr.bf16.mxu0 0
        %789 = vmatpush1.bf16.xpose.msra.mxu0 0
        %790 = vmatprep.subr.bf16.mxu0 0
        %791 = vmatpush1.bf16.xpose.msra.mxu0 0
        %792 = vmatprep.subr.bf16.mxu0 0
        %793 = vmatpush1.bf16.xpose.msra.mxu0 0
        %794 = vmatprep.subr.bf16.mxu0 0
        %795 = vmatpush1.bf16.xpose.msra.mxu0 0
        %796 = vmatprep.subr.bf16.mxu0 0
        %797 = vmatpush1.bf16.xpose.msra.mxu0 0
        %798 = vmatprep.subr.bf16.mxu0 0
        %799 = vmatpush1.bf16.xpose.msra.mxu0 0
        %800 = vmatprep.mubr.bf16.mxu0 0
        %801 = vmatmul.mubr.bf16.gmra.mrb[0].mxu0 %v763
        %v802 = vpop.f32.mrb[0].mxu0
        %v803 = vadd.f32 0.0, %v802
        %v804 = vpop.f32.mrb[0].mxu0
        %v805 = vpop.f32.mrb[0].mxu0
        %v806 = vadd.f32 0.0, %v805
        %v807 = vpop.f32.mrb[0].mxu0
        %808 = vdwg.mxu0
        %v809 = vmul.f32 %v803, 0.125
        %v810 = vmul.f32 %v806, 0.125
        %v811 = vsel %vm380, %v809, -inf
        %812 = vmax.xlane.f32.xlu0 %v811
        %v813 = vpop.xlane.xlu0 %812
        %v814 = vsel %vm380, %v810, -inf
        %815 = vmax.xlane.f32.xlu0 %v814
        %v816 = vpop.xlane.xlu0 %815
        %v817 = vsub.f32 %v809, %v813
        %v818 = vsub.f32 %v810, %v816
        %v819 = vmul.f32 %v817, 1.442695
        %v820 = vpow.pop %v819
        %v821 = vmul.f32 %v818, 1.442695
        %v822 = vpow.pop %v821
        %v823 = vsel %vm380, %v820, 0.0
        %824 = vadd.xlane.f32.xlu0 %v823
        %v825 = vpop.xlane.xlu0 %824
        %v826 = vsel %vm380, %v822, 0.0
        %827 = vadd.xlane.f32.xlu0 %v826
        %v828 = vpop.xlane.xlu0 %827
        %v829 = vrcp.pop %v825
        %v830 = vrcp.pop %v828
        %v831 = vmul.f32 %v820, %v829
        %v832 = vmul.f32 %v822, %v830
        %v833 = vpack.c.bf16 %v832, %v831
        %v835 = vsel %vm380, %v833, 0
        %837 = vmatprep.subr.bf16.mxu0 0
        %838 = vmatpush1.bf16.msra.mxu0 %v518
        %839 = vmatprep.subr.bf16.mxu0 0
        %840 = vmatpush1.bf16.msra.mxu0 0
        %841 = vmatprep.subr.bf16.mxu0 0
        %842 = vmatpush1.bf16.msra.mxu0 0
        %843 = vmatprep.subr.bf16.mxu0 0
        %844 = vmatpush1.bf16.msra.mxu0 0
        %845 = vmatprep.subr.bf16.mxu0 0
        %846 = vmatpush1.bf16.msra.mxu0 0
        %847 = vmatprep.subr.bf16.mxu0 0
        %848 = vmatpush1.bf16.msra.mxu0 0
        %849 = vmatprep.subr.bf16.mxu0 0
        %850 = vmatpush1.bf16.msra.mxu0 0
        %851 = vmatprep.subr.bf16.mxu0 0
        %852 = vmatpush1.bf16.msra.mxu0 0
        %853 = vmatprep.subr.bf16.mxu0 0
        %854 = vmatpush1.bf16.msra.mxu0 0
        %855 = vmatprep.subr.bf16.mxu0 0
        %856 = vmatpush1.bf16.msra.mxu0 0
        %857 = vmatprep.subr.bf16.mxu0 0
        %858 = vmatpush1.bf16.msra.mxu0 0
        %859 = vmatprep.subr.bf16.mxu0 0
        %860 = vmatpush1.bf16.msra.mxu0 0
        %861 = vmatprep.subr.bf16.mxu0 0
        %862 = vmatpush1.bf16.msra.mxu0 0
        %863 = vmatprep.subr.bf16.mxu0 0
        %864 = vmatpush1.bf16.msra.mxu0 0
        %865 = vmatprep.subr.bf16.mxu0 0
        %866 = vmatpush1.bf16.msra.mxu0 0
        %867 = vmatprep.subr.bf16.mxu0 0
        %868 = vmatpush1.bf16.msra.mxu0 0
        %869 = vmatprep.mubr.bf16.mxu0 0
        %870 = vmatmul.mubr.bf16.gmra.mrb[0].mxu0 %v835
        %v871 = vpop.f32.mrb[0].mxu0
        %v872 = vadd.f32 0.0, %v871
        %v873 = vpop.f32.mrb[0].mxu0
        %v874 = vpop.f32.mrb[0].mxu0
        %v875 = vadd.f32 0.0, %v874
        %v876 = vpop.f32.mrb[0].mxu0
        %877 = vdwg.mxu0
        %879 = vrot.lane.b32.xlu0 %v514, 64
        %v880 = vpop.permute.xlu0 %879
        %882 = vrot.lane.b32.xlu0 %v516, 64
        %v883 = vpop.permute.xlu0 %882
        %v885 = vsel %vm519, %v880, 0
        %v888 = vsel %vm519, %v883, 0
        %890 = vmatprep.subr.bf16.mxu0 0
        %891 = vmatpush1.bf16.xpose.msra.mxu0 %v888
        %892 = vmatprep.subr.bf16.mxu0 0
        %893 = vmatpush1.bf16.xpose.msra.mxu0 0
        %894 = vmatprep.subr.bf16.mxu0 0
        %895 = vmatpush1.bf16.xpose.msra.mxu0 0
        %896 = vmatprep.subr.bf16.mxu0 0
        %897 = vmatpush1.bf16.xpose.msra.mxu0 0
        %898 = vmatprep.subr.bf16.mxu0 0
        %899 = vmatpush1.bf16.xpose.msra.mxu0 0
        %900 = vmatprep.subr.bf16.mxu0 0
        %901 = vmatpush1.bf16.xpose.msra.mxu0 0
        %902 = vmatprep.subr.bf16.mxu0 0
        %903 = vmatpush1.bf16.xpose.msra.mxu0 0
        %904 = vmatprep.subr.bf16.mxu0 0
        %905 = vmatpush1.bf16.xpose.msra.mxu0 0
        %906 = vmatprep.subr.bf16.mxu0 0
        %907 = vmatpush1.bf16.xpose.msra.mxu0 0
        %908 = vmatprep.subr.bf16.mxu0 0
        %909 = vmatpush1.bf16.xpose.msra.mxu0 0
        %910 = vmatprep.subr.bf16.mxu0 0
        %911 = vmatpush1.bf16.xpose.msra.mxu0 0
        %912 = vmatprep.subr.bf16.mxu0 0
        %913 = vmatpush1.bf16.xpose.msra.mxu0 0
        %914 = vmatprep.subr.bf16.mxu0 0
        %915 = vmatpush1.bf16.xpose.msra.mxu0 0
        %916 = vmatprep.subr.bf16.mxu0 0
        %917 = vmatpush1.bf16.xpose.msra.mxu0 0
        %918 = vmatprep.subr.bf16.mxu0 0
        %919 = vmatpush1.bf16.xpose.msra.mxu0 0
        %920 = vmatprep.subr.bf16.mxu0 0
        %921 = vmatpush1.bf16.xpose.msra.mxu0 0
        %922 = vmatprep.mubr.bf16.mxu0 0
        %923 = vmatmul.mubr.bf16.gmra.mrb[0].mxu0 %v885
        %v924 = vpop.f32.mrb[0].mxu0
        %v925 = vadd.f32 0.0, %v924
        %v926 = vpop.f32.mrb[0].mxu0
        %v927 = vpop.f32.mrb[0].mxu0
        %v928 = vadd.f32 0.0, %v927
        %v929 = vpop.f32.mrb[0].mxu0
        %930 = vdwg.mxu0
        %v931 = vmul.f32 %v925, 0.125
        %v932 = vmul.f32 %v928, 0.125
        %v933 = vsel %vm380, %v931, -inf
        %934 = vmax.xlane.f32.xlu0 %v933
        %v935 = vpop.xlane.xlu0 %934
        %v936 = vsel %vm380, %v932, -inf
        %937 = vmax.xlane.f32.xlu0 %v936
        %v938 = vpop.xlane.xlu0 %937
        %v939 = vsub.f32 %v931, %v935
        %v940 = vsub.f32 %v932, %v938
        %v941 = vmul.f32 %v939, 1.442695
        %v942 = vpow.pop %v941
        %v943 = vmul.f32 %v940, 1.442695
        %v944 = vpow.pop %v943
        %v945 = vsel %vm380, %v942, 0.0
        %946 = vadd.xlane.f32.xlu0 %v945
        %v947 = vpop.xlane.xlu0 %946
        %v948 = vsel %vm380, %v944, 0.0
        %949 = vadd.xlane.f32.xlu0 %v948
        %v950 = vpop.xlane.xlu0 %949
        %v951 = vrcp.pop %v947
        %v952 = vrcp.pop %v950
        %v953 = vmul.f32 %v942, %v951
        %v954 = vmul.f32 %v944, %v952
        %v955 = vpack.c.bf16 %v954, %v953
        %957 = vrot.lane.b32.xlu0 %v518, 64
        %v958 = vpop.permute.xlu0 %957
        %v961 = vsel %vm380, %v955, 0
        %963 = vmatprep.subr.bf16.mxu0 0
        %964 = vmatpush1.bf16.msra.mxu0 %v958
        %965 = vmatprep.subr.bf16.mxu0 0
        %966 = vmatpush1.bf16.msra.mxu0 0
        %967 = vmatprep.subr.bf16.mxu0 0
        %968 = vmatpush1.bf16.msra.mxu0 0
        %969 = vmatprep.subr.bf16.mxu0 0
        %970 = vmatpush1.bf16.msra.mxu0 0
        %971 = vmatprep.subr.bf16.mxu0 0
        %972 = vmatpush1.bf16.msra.mxu0 0
        %973 = vmatprep.subr.bf16.mxu0 0
        %974 = vmatpush1.bf16.msra.mxu0 0
        %975 = vmatprep.subr.bf16.mxu0 0
        %976 = vmatpush1.bf16.msra.mxu0 0
        %977 = vmatprep.subr.bf16.mxu0 0
        %978 = vmatpush1.bf16.msra.mxu0 0
        %979 = vmatprep.subr.bf16.mxu0 0
        %980 = vmatpush1.bf16.msra.mxu0 0
        %981 = vmatprep.subr.bf16.mxu0 0
        %982 = vmatpush1.bf16.msra.mxu0 0
        %983 = vmatprep.subr.bf16.mxu0 0
        %984 = vmatpush1.bf16.msra.mxu0 0
        %985 = vmatprep.subr.bf16.mxu0 0
        %986 = vmatpush1.bf16.msra.mxu0 0
        %987 = vmatprep.subr.bf16.mxu0 0
        %988 = vmatpush1.bf16.msra.mxu0 0
        %989 = vmatprep.subr.bf16.mxu0 0
        %990 = vmatpush1.bf16.msra.mxu0 0
        %991 = vmatprep.subr.bf16.mxu0 0
        %992 = vmatpush1.bf16.msra.mxu0 0
        %993 = vmatprep.subr.bf16.mxu0 0
        %994 = vmatpush1.bf16.msra.mxu0 0
        %995 = vmatprep.mubr.bf16.mxu0 0
        %996 = vmatmul.mubr.bf16.gmra.mrb[0].mxu0 %v961
        %v997 = vpop.f32.mrb[0].mxu0
        %v998 = vadd.f32 0.0, %v997
        %v999 = vpop.f32.mrb[0].mxu0
        %v1000 = vpop.f32.mrb[0].mxu0
        %v1001 = vadd.f32 0.0, %v1000
        %v1002 = vpop.f32.mrb[0].mxu0
        %1003 = vdwg.mxu0
        %1006 = vrot.lane.b32.xlu0 %v756, 64
        %v1007 = vpop.permute.xlu0 %1006
        %1008 = vrot.lane.b32.xlu0 %v759, 64
        %v1009 = vpop.permute.xlu0 %1008
        %1014 = vrot.lane.b32.xlu0 %v998, 64
        %v1015 = vpop.permute.xlu0 %1014
        %1016 = vrot.lane.b32.xlu0 %v1001, 64
        %v1017 = vpop.permute.xlu0 %1016
        %v1020 = vsel %vm519, %v630, %v1007
        %v1021 = vsel %vm519, %v633, %v1009
        %v1022 = vsel %vm519, %v872, %v1015
        %v1023 = vsel %vm519, %v875, %v1017
        %v1024 = vadd.f32 %v1020, %v1022
        %1025 = vadd.xlane.f32.xlu0 %v1024
        %v1026 = vpop.xlane.xlu0 %1025
        %v1027 = vadd.f32 %v1021, %v1023
        %1028 = vadd.xlane.f32.xlu0 %v1027
        %v1029 = vpop.xlane.xlu0 %1028
        %v1030 = vrcp.pop 256.0
        %v1031 = vmul.f32 %v1026, %v1030
        %v1032 = vmul.f32 %v1029, %v1030
        %v1033 = vsub.f32 %v1020, %v1031
        %v1034 = vsub.f32 %v1022, %v1031
        %v1035 = vsub.f32 %v1021, %v1032
        %v1036 = vsub.f32 %v1023, %v1032
        %v1037 = vmul.f32 %v1033, %v1033
        %v1038 = vmul.f32 %v1034, %v1034
        %v1039 = vmul.f32 %v1035, %v1035
        %v1040 = vmul.f32 %v1036, %v1036
        %v1041 = vadd.f32 %v1037, %v1038
        %1042 = vadd.xlane.f32.xlu0 %v1041
        %v1043 = vpop.xlane.xlu0 %1042
        %v1044 = vadd.f32 %v1039, %v1040
        %1045 = vadd.xlane.f32.xlu0 %v1044
        %v1046 = vpop.xlane.xlu0 %1045
        %v1047 = vmul.f32 %v1043, %v1030
        %v1048 = vmul.f32 %v1046, %v1030
        %v1049 = vadd.f32 %v1047, 1e-05
        %v1050 = vadd.f32 %v1048, 1e-05
        %v1051 = vrsqrt.pop %v1049
        %v1052 = vrsqrt.pop %v1050
        %v1053 = vmul.f32 %v1033, %v1051
        %v1054 = vmul.f32 %v1034, %v1051
        %v1055 = vmul.f32 %v1035, %v1052
        %v1056 = vmul.f32 %v1036, %v1052
        %v1057 = vld [vmem:[%s3] sm:$0x3]
        %v1059 = vlaneseq
        %v1060 = vshrl.u32 %v1059, 7
        %v1061 = vsub.s32 0, %v1060
        %v1062 = vrot.slane %v1057, %v1061
        %v1063 = vlaneseq
        %v1064 = vshrl.u32 %v1063, 7
        %v1065 = vsub.s32 1, %v1064
        %v1066 = vrot.slane %v1057, %v1065
        %v1069 = vmul.f32 %v1053, %v1062
        %v1070 = vmul.f32 %v1054, %v1066
        %v1071 = vmul.f32 %v1055, %v1062
        %v1072 = vmul.f32 %v1056, %v1066
        %v1073 = vld [vmem:[%s4] sm:$0x3]
        %v1075 = vlaneseq
        %v1076 = vshrl.u32 %v1075, 7
        %v1077 = vsub.s32 0, %v1076
        %v1078 = vrot.slane %v1073, %v1077
        %v1079 = vlaneseq
        %v1080 = vshrl.u32 %v1079, 7
        %v1081 = vsub.s32 1, %v1080
        %v1082 = vrot.slane %v1073, %v1081
        %v1085 = vadd.f32 %v1069, %v1078
        %v1086 = vadd.f32 %v1070, %v1082
        %v1087 = vadd.f32 %v1071, %v1078
        %v1088 = vadd.f32 %v1072, %v1082
        %v1089 = vpack.c.bf16 %v1087, %v1085
        %v1090 = vpack.c.bf16 %v1088, %v1086
        %v1091 = vld [vmem:[%s5] sm:$0xff]
        %v1092 = vld [vmem:[%s5 + $0x8] sm:$0xff]
        %v1093 = vld [vmem:[%s5 + $0x10] sm:$0xff]
        %v1094 = vld [vmem:[%s5 + $0x18] sm:$0xff]
        %v1095 = vld [vmem:[%s5 + $0x20] sm:$0xff]
        %v1096 = vld [vmem:[%s5 + $0x28] sm:$0xff]
        %v1097 = vld [vmem:[%s5 + $0x30] sm:$0xff]
        %v1098 = vld [vmem:[%s5 + $0x38] sm:$0xff]
        %v1099 = vld [vmem:[%s5 + $0x40] sm:$0xff]
        %v1100 = vld [vmem:[%s5 + $0x48] sm:$0xff]
        %v1101 = vld [vmem:[%s5 + $0x50] sm:$0xff]
        %v1102 = vld [vmem:[%s5 + $0x58] sm:$0xff]
        %v1103 = vld [vmem:[%s5 + $0x60] sm:$0xff]
        %v1104 = vld [vmem:[%s5 + $0x68] sm:$0xff]
        %v1105 = vld [vmem:[%s5 + $0x70] sm:$0xff]
        %v1106 = vld [vmem:[%s5 + $0x78] sm:$0xff]
        %v1107 = vld [vmem:[%s5 + $0x80] sm:$0xff]
        %v1108 = vld [vmem:[%s5 + $0x88] sm:$0xff]
        %v1109 = vld [vmem:[%s5 + $0x90] sm:$0xff]
        %v1110 = vld [vmem:[%s5 + $0x98] sm:$0xff]
        %v1111 = vld [vmem:[%s5 + $0xa0] sm:$0xff]
        %v1112 = vld [vmem:[%s5 + $0xa8] sm:$0xff]
        %v1113 = vld [vmem:[%s5 + $0xb0] sm:$0xff]
        %v1114 = vld [vmem:[%s5 + $0xb8] sm:$0xff]
        %v1115 = vld [vmem:[%s5 + $0xc0] sm:$0xff]
        %v1116 = vld [vmem:[%s5 + $0xc8] sm:$0xff]
        %v1117 = vld [vmem:[%s5 + $0xd0] sm:$0xff]
        %v1118 = vld [vmem:[%s5 + $0xd8] sm:$0xff]
        %v1119 = vld [vmem:[%s5 + $0xe0] sm:$0xff]
        %v1120 = vld [vmem:[%s5 + $0xe8] sm:$0xff]
        %v1121 = vld [vmem:[%s5 + $0xf0] sm:$0xff]
        %v1122 = vld [vmem:[%s5 + $0xf8] sm:$0xff]
        %v1123 = vld [vmem:[%s6] sm:$0x3]
        %v1125 = vlaneseq
        %v1126 = vshrl.u32 %v1125, 7
        %v1127 = vsub.s32 0, %v1126
        %v1128 = vrot.slane %v1123, %v1127
        %v1129 = vlaneseq
        %v1130 = vshrl.u32 %v1129, 7
        %v1131 = vsub.s32 1, %v1130
        %v1132 = vrot.slane %v1123, %v1131
        %v1167 = vunpack.c.l.b16 %v1091
        %v1168 = vunpack.c.h.b16 %v1091
        %v1169 = vunpack.c.l.b16 %v1092
        %v1170 = vunpack.c.h.b16 %v1092
        %v1171 = vunpack.c.l.b16 %v1093
        %v1172 = vunpack.c.h.b16 %v1093
        %v1173 = vunpack.c.l.b16 %v1094
        %v1174 = vunpack.c.h.b16 %v1094
        %v1175 = vunpack.c.l.b16 %v1095
        %v1176 = vunpack.c.h.b16 %v1095
        %v1177 = vunpack.c.l.b16 %v1096
        %v1178 = vunpack.c.h.b16 %v1096
        %v1179 = vunpack.c.l.b16 %v1097
        %v1180 = vunpack.c.h.b16 %v1097
        %v1181 = vunpack.c.l.b16 %v1098
        %v1182 = vunpack.c.h.b16 %v1098
        %v1183 = vunpack.c.l.b16 %v1099
        %v1184 = vunpack.c.h.b16 %v1099
        %v1185 = vunpack.c.l.b16 %v1100
        %v1186 = vunpack.c.h.b16 %v1100
        %v1187 = vunpack.c.l.b16 %v1101
        %v1188 = vunpack.c.h.b16 %v1101
        %v1189 = vunpack.c.l.b16 %v1102
        %v1190 = vunpack.c.h.b16 %v1102
        %v1191 = vunpack.c.l.b16 %v1103
        %v1192 = vunpack.c.h.b16 %v1103
        %v1193 = vunpack.c.l.b16 %v1104
        %v1194 = vunpack.c.h.b16 %v1104
        %v1195 = vunpack.c.l.b16 %v1105
        %v1196 = vunpack.c.h.b16 %v1105
        %v1197 = vunpack.c.l.b16 %v1106
        %v1198 = vunpack.c.h.b16 %v1106
        %v1199 = vunpack.c.l.b16 %v1107
        %v1200 = vunpack.c.h.b16 %v1107
        %v1201 = vunpack.c.l.b16 %v1108
        %v1202 = vunpack.c.h.b16 %v1108
        %v1203 = vunpack.c.l.b16 %v1109
        %v1204 = vunpack.c.h.b16 %v1109
        %v1205 = vunpack.c.l.b16 %v1110
        %v1206 = vunpack.c.h.b16 %v1110
        %v1207 = vunpack.c.l.b16 %v1111
        %v1208 = vunpack.c.h.b16 %v1111
        %v1209 = vunpack.c.l.b16 %v1112
        %v1210 = vunpack.c.h.b16 %v1112
        %v1211 = vunpack.c.l.b16 %v1113
        %v1212 = vunpack.c.h.b16 %v1113
        %v1213 = vunpack.c.l.b16 %v1114
        %v1214 = vunpack.c.h.b16 %v1114
        %v1215 = vunpack.c.l.b16 %v1115
        %v1216 = vunpack.c.h.b16 %v1115
        %v1217 = vunpack.c.l.b16 %v1116
        %v1218 = vunpack.c.h.b16 %v1116
        %v1219 = vunpack.c.l.b16 %v1117
        %v1220 = vunpack.c.h.b16 %v1117
        %v1221 = vunpack.c.l.b16 %v1118
        %v1222 = vunpack.c.h.b16 %v1118
        %v1223 = vunpack.c.l.b16 %v1119
        %v1224 = vunpack.c.h.b16 %v1119
        %v1225 = vunpack.c.l.b16 %v1120
        %v1226 = vunpack.c.h.b16 %v1120
        %v1227 = vunpack.c.l.b16 %v1121
        %v1228 = vunpack.c.h.b16 %v1121
        %v1229 = vunpack.c.l.b16 %v1122
        %v1230 = vunpack.c.h.b16 %v1122
        %v1231 = vpack.c.b16 %v1169, %v1167
        %v1232 = vpack.c.b16 %v1170, %v1168
        %v1233 = vpack.c.b16 %v1173, %v1171
        %v1234 = vpack.c.b16 %v1174, %v1172
        %v1235 = vpack.c.b16 %v1177, %v1175
        %v1236 = vpack.c.b16 %v1178, %v1176
        %v1237 = vpack.c.b16 %v1181, %v1179
        %v1238 = vpack.c.b16 %v1182, %v1180
        %v1239 = vpack.c.b16 %v1185, %v1183
        %v1240 = vpack.c.b16 %v1186, %v1184
        %v1241 = vpack.c.b16 %v1189, %v1187
        %v1242 = vpack.c.b16 %v1190, %v1188
        %v1243 = vpack.c.b16 %v1193, %v1191
        %v1244 = vpack.c.b16 %v1194, %v1192
        %v1245 = vpack.c.b16 %v1197, %v1195
        %v1246 = vpack.c.b16 %v1198, %v1196
        %v1247 = vpack.c.b16 %v1201, %v1199
        %v1248 = vpack.c.b16 %v1202, %v1200
        %v1249 = vpack.c.b16 %v1205, %v1203
        %v1250 = vpack.c.b16 %v1206, %v1204
        %v1251 = vpack.c.b16 %v1209, %v1207
        %v1252 = vpack.c.b16 %v1210, %v1208
        %v1253 = vpack.c.b16 %v1213, %v1211
        %v1254 = vpack.c.b16 %v1214, %v1212
        %v1255 = vpack.c.b16 %v1217, %v1215
        %v1256 = vpack.c.b16 %v1218, %v1216
        %v1257 = vpack.c.b16 %v1221, %v1219
        %v1258 = vpack.c.b16 %v1222, %v1220
        %v1259 = vpack.c.b16 %v1225, %v1223
        %v1260 = vpack.c.b16 %v1226, %v1224
        %v1261 = vpack.c.b16 %v1229, %v1227
        %v1262 = vpack.c.b16 %v1230, %v1228
        %1295 = vmatprep.subr.bf16.mxu0 %v1232
        %1296 = vmatpush1.bf16.msra.mxu0 %v1231
        %1297 = vmatprep.subr.bf16.mxu0 %v1234
        %1298 = vmatpush1.bf16.msra.mxu0 %v1233
        %1299 = vmatprep.subr.bf16.mxu0 %v1236
        %1300 = vmatpush1.bf16.msra.mxu0 %v1235
        %1301 = vmatprep.subr.bf16.mxu0 %v1238
        %1302 = vmatpush1.bf16.msra.mxu0 %v1237
        %1303 = vmatprep.subr.bf16.mxu0 %v1240
        %1304 = vmatpush1.bf16.msra.mxu0 %v1239
        %1305 = vmatprep.subr.bf16.mxu0 %v1242
        %1306 = vmatpush1.bf16.msra.mxu0 %v1241
        %1307 = vmatprep.subr.bf16.mxu0 %v1244
        %1308 = vmatpush1.bf16.msra.mxu0 %v1243
        %1309 = vmatprep.subr.bf16.mxu0 %v1246
        %1310 = vmatpush1.bf16.msra.mxu0 %v1245
        %1311 = vmatprep.subr.bf16.mxu0 %v1248
        %1312 = vmatpush1.bf16.msra.mxu0 %v1247
        %1313 = vmatprep.subr.bf16.mxu0 %v1250
        %1314 = vmatpush1.bf16.msra.mxu0 %v1249
        %1315 = vmatprep.subr.bf16.mxu0 %v1252
        %1316 = vmatpush1.bf16.msra.mxu0 %v1251
        %1317 = vmatprep.subr.bf16.mxu0 %v1254
        %1318 = vmatpush1.bf16.msra.mxu0 %v1253
        %1319 = vmatprep.subr.bf16.mxu0 %v1256
        %1320 = vmatpush1.bf16.msra.mxu0 %v1255
        %1321 = vmatprep.subr.bf16.mxu0 %v1258
        %1322 = vmatpush1.bf16.msra.mxu0 %v1257
        %1323 = vmatprep.subr.bf16.mxu0 %v1260
        %1324 = vmatpush1.bf16.msra.mxu0 %v1259
        %1325 = vmatprep.subr.bf16.mxu0 %v1262
        %1326 = vmatpush1.bf16.msra.mxu0 %v1261
        %1327 = vmatprep.mubr.bf16.mxu0 %v1090
        %1328 = vmatmul.mubr.bf16.gmra.mrb[0].mxu0 %v1089
        %v1329 = vpop.f32.mrb[0].mxu0
        %v1330 = vadd.f32 %v1128, %v1329
        %v1331 = vpop.f32.mrb[0].mxu0
        %v1332 = vadd.f32 %v1132, %v1331
        %v1333 = vpop.f32.mrb[0].mxu0
        %v1334 = vadd.f32 %v1128, %v1333
        %v1335 = vpop.f32.mrb[0].mxu0
        %v1336 = vadd.f32 %v1132, %v1335
        %1337 = vdwg.mxu0
        %v1338 = vmul.f32 %v1330, %v1330
        %v1339 = vmul.f32 %v1332, %v1332
        %v1340 = vmul.f32 %v1334, %v1334
        %v1341 = vmul.f32 %v1336, %v1336
        %v1342 = vmul.f32 %v1330, %v1338
        %v1343 = vmul.f32 %v1332, %v1339
        %v1344 = vmul.f32 %v1334, %v1340
        %v1345 = vmul.f32 %v1336, %v1341
        %v1346 = vmul.f32 %v1342, 0.044715
        %v1347 = vmul.f32 %v1343, 0.044715
        %v1348 = vmul.f32 %v1344, 0.044715
        %v1349 = vmul.f32 %v1345, 0.044715
        %v1350 = vadd.f32 %v1330, %v1346
        %v1351 = vadd.f32 %v1332, %v1347
        %v1352 = vadd.f32 %v1334, %v1348
        %v1353 = vadd.f32 %v1336, %v1349
        %v1354 = vmul.f32 %v1350, 0.7978846
        %v1355 = vmul.f32 %v1351, 0.7978846
        %v1356 = vmul.f32 %v1352, 0.7978846
        %v1357 = vmul.f32 %v1353, 0.7978846
        %v1358 = vtanh.pop %v1354
        %v1359 = vtanh.pop %v1355
        %v1360 = vtanh.pop %v1356
        %v1361 = vtanh.pop %v1357
        %v1362 = vadd.f32 %v1358, 1.0
        %v1363 = vadd.f32 %v1359, 1.0
        %v1364 = vadd.f32 %v1360, 1.0
        %v1365 = vadd.f32 %v1361, 1.0
        %v1366 = vmul.f32 %v1362, 0.5
        %v1367 = vmul.f32 %v1363, 0.5
        %v1368 = vmul.f32 %v1364, 0.5
        %v1369 = vmul.f32 %v1365, 0.5
        %v1370 = vmul.f32 %v1330, %v1366
        %v1371 = vmul.f32 %v1332, %v1367
        %v1372 = vmul.f32 %v1334, %v1368
        %v1373 = vmul.f32 %v1336, %v1369
        %v1376 = vunpack.c.l.b16 %v337
        %v1377 = vunpack.c.h.b16 %v337
        %v1378 = vunpack.c.l.b16 %v338
        %v1379 = vunpack.c.h.b16 %v338
        %v1380 = vpack.c.b16 %v1378, %v1376
        %v1381 = vpack.c.b16 %v1379, %v1377
        %1384 = vmatprep.subr.bf16.mxu0 %v1381
        %1385 = vmatpush1.bf16.msra.mxu0 %v1380
        %1386 = vmatprep.subr.bf16.mxu0 0
        %1387 = vmatpush1.bf16.msra.mxu0 0
        %1388 = vmatprep.subr.bf16.mxu0 0
        %1389 = vmatpush1.bf16.msra.mxu0 0
        %1390 = vmatprep.subr.bf16.mxu0 0
        %1391 = vmatpush1.bf16.msra.mxu0 0
        %1392 = vmatprep.subr.bf16.mxu0 0
        %1393 = vmatpush1.bf16.msra.mxu0 0
        %1394 = vmatprep.subr.bf16.mxu0 0
        %1395 = vmatpush1.bf16.msra.mxu0 0
        %1396 = vmatprep.subr.bf16.mxu0 0
        %1397 = vmatpush1.bf16.msra.mxu0 0
        %1398 = vmatprep.subr.bf16.mxu0 0
        %1399 = vmatpush1.bf16.msra.mxu0 0
        %1400 = vmatprep.subr.bf16.mxu0 0
        %1401 = vmatpush1.bf16.msra.mxu0 0
        %1402 = vmatprep.subr.bf16.mxu0 0
        %1403 = vmatpush1.bf16.msra.mxu0 0
        %1404 = vmatprep.subr.bf16.mxu0 0
        %1405 = vmatpush1.bf16.msra.mxu0 0
        %1406 = vmatprep.subr.bf16.mxu0 0
        %1407 = vmatpush1.bf16.msra.mxu0 0
        %1408 = vmatprep.subr.bf16.mxu0 0
        %1409 = vmatpush1.bf16.msra.mxu0 0
        %1410 = vmatprep.subr.bf16.mxu0 0
        %1411 = vmatpush1.bf16.msra.mxu0 0
        %1412 = vmatprep.subr.bf16.mxu0 0
        %1413 = vmatpush1.bf16.msra.mxu0 0
        %1414 = vmatprep.subr.bf16.mxu0 0
        %1415 = vmatpush1.bf16.msra.mxu0 0
        %1416 = vmatprep.mubr.bf16.mxu0 0
        %1417 = vmatmul.mubr.bf16.gmra.mrb[0].mxu0 %v382
        %v1418 = vpop.f32.mrb[0].mxu0
        %v1419 = vadd.f32 %v1370, %v1418
        %v1420 = vpop.f32.mrb[0].mxu0
        %v1421 = vadd.f32 %v1371, %v1420
        %v1422 = vpop.f32.mrb[0].mxu0
        %v1423 = vadd.f32 %v1372, %v1422
        %v1424 = vpop.f32.mrb[0].mxu0
        %v1425 = vadd.f32 %v1373, %v1424
        %1426 = vdwg.mxu0
        %v1427 = vpack.c.bf16 %v1423, %v1419
        %v1428 = vpack.c.bf16 %v1425, %v1421
        %v1429 = vld [vmem:[%s7] sm:$0xff]
        %v1430 = vld [vmem:[%s7 + $0x8] sm:$0xff]
        %v1431 = vld [vmem:[%s7 + $0x10] sm:$0xff]
        %v1432 = vld [vmem:[%s7 + $0x18] sm:$0xff]
        %v1433 = vld [vmem:[%s7 + $0x20] sm:$0xff]
        %v1434 = vld [vmem:[%s7 + $0x28] sm:$0xff]
        %v1435 = vld [vmem:[%s7 + $0x30] sm:$0xff]
        %v1436 = vld [vmem:[%s7 + $0x38] sm:$0xff]
        %v1437 = vld [vmem:[%s7 + $0x40] sm:$0xff]
        %v1438 = vld [vmem:[%s7 + $0x48] sm:$0xff]
        %v1439 = vld [vmem:[%s7 + $0x50] sm:$0xff]
        %v1440 = vld [vmem:[%s7 + $0x58] sm:$0xff]
        %v1441 = vld [vmem:[%s7 + $0x60] sm:$0xff]
        %v1442 = vld [vmem:[%s7 + $0x68] sm:$0xff]
        %v1443 = vld [vmem:[%s7 + $0x70] sm:$0xff]
        %v1444 = vld [vmem:[%s7 + $0x78] sm:$0xff]
        %v1445 = vld [vmem:[%s7 + $0x80] sm:$0xff]
        %v1446 = vld [vmem:[%s7 + $0x88] sm:$0xff]
        %v1447 = vld [vmem:[%s7 + $0x90] sm:$0xff]
        %v1448 = vld [vmem:[%s7 + $0x98] sm:$0xff]
        %v1449 = vld [vmem:[%s7 + $0xa0] sm:$0xff]
        %v1450 = vld [vmem:[%s7 + $0xa8] sm:$0xff]
        %v1451 = vld [vmem:[%s7 + $0xb0] sm:$0xff]
        %v1452 = vld [vmem:[%s7 + $0xb8] sm:$0xff]
        %v1453 = vld [vmem:[%s7 + $0xc0] sm:$0xff]
        %v1454 = vld [vmem:[%s7 + $0xc8] sm:$0xff]
        %v1455 = vld [vmem:[%s7 + $0xd0] sm:$0xff]
        %v1456 = vld [vmem:[%s7 + $0xd8] sm:$0xff]
        %v1457 = vld [vmem:[%s7 + $0xe0] sm:$0xff]
        %v1458 = vld [vmem:[%s7 + $0xe8] sm:$0xff]
        %v1459 = vld [vmem:[%s7 + $0xf0] sm:$0xff]
        %v1460 = vld [vmem:[%s7 + $0xf8] sm:$0xff]
        %v1461 = vld [vmem:[%s8] sm:$0x3]
        %v1463 = vlaneseq
        %v1464 = vshrl.u32 %v1463, 7
        %v1465 = vsub.s32 0, %v1464
        %v1466 = vrot.slane %v1461, %v1465
        %v1467 = vlaneseq
        %v1468 = vshrl.u32 %v1467, 7
        %v1469 = vsub.s32 1, %v1468
        %v1470 = vrot.slane %v1461, %v1469
        %v1505 = vunpack.c.l.b16 %v1429
        %v1506 = vunpack.c.h.b16 %v1429
        %v1507 = vunpack.c.l.b16 %v1430
        %v1508 = vunpack.c.h.b16 %v1430
        %v1509 = vunpack.c.l.b16 %v1431
        %v1510 = vunpack.c.h.b16 %v1431
        %v1511 = vunpack.c.l.b16 %v1432
        %v1512 = vunpack.c.h.b16 %v1432
        %v1513 = vunpack.c.l.b16 %v1433
        %v1514 = vunpack.c.h.b16 %v1433
        %v1515 = vunpack.c.l.b16 %v1434
        %v1516 = vunpack.c.h.b16 %v1434
        %v1517 = vunpack.c.l.b16 %v1435
        %v1518 = vunpack.c.h.b16 %v1435
        %v1519 = vunpack.c.l.b16 %v1436
        %v1520 = vunpack.c.h.b16 %v1436
        %v1521 = vunpack.c.l.b16 %v1437
        %v1522 = vunpack.c.h.b16 %v1437
        %v1523 = vunpack.c.l.b16 %v1438
        %v1524 = vunpack.c.h.b16 %v1438
        %v1525 = vunpack.c.l.b16 %v1439
        %v1526 = vunpack.c.h.b16 %v1439
        %v1527 = vunpack.c.l.b16 %v1440
        %v1528 = vunpack.c.h.b16 %v1440
        %v1529 = vunpack.c.l.b16 %v1441
        %v1530 = vunpack.c.h.b16 %v1441
        %v1531 = vunpack.c.l.b16 %v1442
        %v1532 = vunpack.c.h.b16 %v1442
        %v1533 = vunpack.c.l.b16 %v1443
        %v1534 = vunpack.c.h.b16 %v1443
        %v1535 = vunpack.c.l.b16 %v1444
        %v1536 = vunpack.c.h.b16 %v1444
        %v1537 = vunpack.c.l.b16 %v1445
        %v1538 = vunpack.c.h.b16 %v1445
        %v1539 = vunpack.c.l.b16 %v1446
        %v1540 = vunpack.c.h.b16 %v1446
        %v1541 = vunpack.c.l.b16 %v1447
        %v1542 = vunpack.c.h.b16 %v1447
        %v1543 = vunpack.c.l.b16 %v1448
        %v1544 = vunpack.c.h.b16 %v1448
        %v1545 = vunpack.c.l.b16 %v1449
        %v1546 = vunpack.c.h.b16 %v1449
        %v1547 = vunpack.c.l.b16 %v1450
        %v1548 = vunpack.c.h.b16 %v1450
        %v1549 = vunpack.c.l.b16 %v1451
        %v1550 = vunpack.c.h.b16 %v1451
        %v1551 = vunpack.c.l.b16 %v1452
        %v1552 = vunpack.c.h.b16 %v1452
        %v1553 = vunpack.c.l.b16 %v1453
        %v1554 = vunpack.c.h.b16 %v1453
        %v1555 = vunpack.c.l.b16 %v1454
        %v1556 = vunpack.c.h.b16 %v1454
        %v1557 = vunpack.c.l.b16 %v1455
        %v1558 = vunpack.c.h.b16 %v1455
        %v1559 = vunpack.c.l.b16 %v1456
        %v1560 = vunpack.c.h.b16 %v1456
        %v1561 = vunpack.c.l.b16 %v1457
        %v1562 = vunpack.c.h.b16 %v1457
        %v1563 = vunpack.c.l.b16 %v1458
        %v1564 = vunpack.c.h.b16 %v1458
        %v1565 = vunpack.c.l.b16 %v1459
        %v1566 = vunpack.c.h.b16 %v1459
        %v1567 = vunpack.c.l.b16 %v1460
        %v1568 = vunpack.c.h.b16 %v1460
        %v1569 = vpack.c.b16 %v1507, %v1505
        %v1570 = vpack.c.b16 %v1508, %v1506
        %v1571 = vpack.c.b16 %v1511, %v1509
        %v1572 = vpack.c.b16 %v1512, %v1510
        %v1573 = vpack.c.b16 %v1515, %v1513
        %v1574 = vpack.c.b16 %v1516, %v1514
        %v1575 = vpack.c.b16 %v1519, %v1517
        %v1576 = vpack.c.b16 %v1520, %v1518
        %v1577 = vpack.c.b16 %v1523, %v1521
        %v1578 = vpack.c.b16 %v1524, %v1522
        %v1579 = vpack.c.b16 %v1527, %v1525
        %v1580 = vpack.c.b16 %v1528, %v1526
        %v1581 = vpack.c.b16 %v1531, %v1529
        %v1582 = vpack.c.b16 %v1532, %v1530
        %v1583 = vpack.c.b16 %v1535, %v1533
        %v1584 = vpack.c.b16 %v1536, %v1534
        %v1585 = vpack.c.b16 %v1539, %v1537
        %v1586 = vpack.c.b16 %v1540, %v1538
        %v1587 = vpack.c.b16 %v1543, %v1541
        %v1588 = vpack.c.b16 %v1544, %v1542
        %v1589 = vpack.c.b16 %v1547, %v1545
        %v1590 = vpack.c.b16 %v1548, %v1546
        %v1591 = vpack.c.b16 %v1551, %v1549
        %v1592 = vpack.c.b16 %v1552, %v1550
        %v1593 = vpack.c.b16 %v1555, %v1553
        %v1594 = vpack.c.b16 %v1556, %v1554
        %v1595 = vpack.c.b16 %v1559, %v1557
        %v1596 = vpack.c.b16 %v1560, %v1558
        %v1597 = vpack.c.b16 %v1563, %v1561
        %v1598 = vpack.c.b16 %v1564, %v1562
        %v1599 = vpack.c.b16 %v1567, %v1565
        %v1600 = vpack.c.b16 %v1568, %v1566
        %1633 = vmatprep.subr.bf16.mxu0 %v1570
        %1634 = vmatpush1.bf16.msra.mxu0 %v1569
        %1635 = vmatprep.subr.bf16.mxu0 %v1572
        %1636 = vmatpush1.bf16.msra.mxu0 %v1571
        %1637 = vmatprep.subr.bf16.mxu0 %v1574
        %1638 = vmatpush1.bf16.msra.mxu0 %v1573
        %1639 = vmatprep.subr.bf16.mxu0 %v1576
        %1640 = vmatpush1.bf16.msra.mxu0 %v1575
        %1641 = vmatprep.subr.bf16.mxu0 %v1578
        %1642 = vmatpush1.bf16.msra.mxu0 %v1577
        %1643 = vmatprep.subr.bf16.mxu0 %v1580
        %1644 = vmatpush1.bf16.msra.mxu0 %v1579
        %1645 = vmatprep.subr.bf16.mxu0 %v1582
        %1646 = vmatpush1.bf16.msra.mxu0 %v1581
        %1647 = vmatprep.subr.bf16.mxu0 %v1584
        %1648 = vmatpush1.bf16.msra.mxu0 %v1583
        %1649 = vmatprep.subr.bf16.mxu0 %v1586
        %1650 = vmatpush1.bf16.msra.mxu0 %v1585
        %1651 = vmatprep.subr.bf16.mxu0 %v1588
        %1652 = vmatpush1.bf16.msra.mxu0 %v1587
        %1653 = vmatprep.subr.bf16.mxu0 %v1590
        %1654 = vmatpush1.bf16.msra.mxu0 %v1589
        %1655 = vmatprep.subr.bf16.mxu0 %v1592
        %1656 = vmatpush1.bf16.msra.mxu0 %v1591
        %1657 = vmatprep.subr.bf16.mxu0 %v1594
        %1658 = vmatpush1.bf16.msra.mxu0 %v1593
        %1659 = vmatprep.subr.bf16.mxu0 %v1596
        %1660 = vmatpush1.bf16.msra.mxu0 %v1595
        %1661 = vmatprep.subr.bf16.mxu0 %v1598
        %1662 = vmatpush1.bf16.msra.mxu0 %v1597
        %1663 = vmatprep.subr.bf16.mxu0 %v1600
        %1664 = vmatpush1.bf16.msra.mxu0 %v1599
        %1665 = vmatprep.mubr.bf16.mxu0 %v1428
        %1666 = vmatmul.mubr.bf16.gmra.mrb[0].mxu0 %v1427
        %v1667 = vpop.f32.mrb[0].mxu0
        %v1668 = vadd.f32 %v1466, %v1667
        %v1669 = vpop.f32.mrb[0].mxu0
        %v1670 = vadd.f32 %v1470, %v1669
        %v1671 = vpop.f32.mrb[0].mxu0
        %v1672 = vadd.f32 %v1466, %v1671
        %v1673 = vpop.f32.mrb[0].mxu0
        %v1674 = vadd.f32 %v1470, %v1673
        %1675 = vdwg.mxu0
        %v1676 = vadd.f32 %v1419, %v1668
        %v1677 = vadd.f32 %v1421, %v1670
        %v1678 = vadd.f32 %v1423, %v1672
        %v1679 = vadd.f32 %v1425, %v1674
        %1680 = vst [vmem:[%s326] sm:$0xff] %v1676
        %1681 = vst [vmem:[%s326 + $0x8] sm:$0xff] %v1677
        %1682 = vst [vmem:[%s326 + $0x10] sm:$0xff] %v1678
        %1683 = vst [vmem:[%s326 + $0x18] sm:$0xff] %v1679
        %s1684 = sand.u32 %s225, 1
        %s1685 = scalar_lea.sflag [#allocation3], %s1684
        %s1686 = sand.u32 %s225, 1
        %s1687 = smul.addr %s1686, 32
        %s1688 = scalar_lea.vmem [#allocation2], %s1687
        // Predicated region
        $region57: #{encoder_forward.1} parent=55 // pred_check
          %p1689 = pneg %p235
        $region58: #{encoder_forward.1} parent=55 // pred_check_branch
          %1691 = sbr.rel (%p1689) target = $region60
        $region59: #{encoder_forward.1} parent=55 // pred_region
          %s1692 = smul.u32 2, %s23
          %s1694 = ssub.s32 512, 512
          %1695 = vsyncadd %s1685, %s1694
          %s1696 = smul.addr %s1692, 2
          %s1697 = smul.addr %s1696, 128
          %s1698 = scalar_lea.hbm %s9, %s1697
          %s1699 = sshll.u32 %s1688, 4
          %s1700 = int_to_ptr.vmem [resolvable:$true] %s1699
          %1705 = dma.vmem_to_hbm [thread:$0]  %s1700, 512, %s1698, %s1685, 256, 256, 16
        $region60: #{encoder_forward.1} parent=55 // pred_fallthru
          _
      $region56: #{encoder_forward.1} parent=5 // pred_fallthru
        _
      %p1706 = scmp.le.s32.totalorder 2, %s18
      // Predicated region
      $region61: #{encoder_forward.1} parent=5 // pred_check
        %p1707 = pneg %p1706
      $region62: #{encoder_forward.1} parent=5 // pred_check_branch
        %1709 = sbr.rel (%p1707) target = $region64
      $region63: #{encoder_forward.1} parent=5 // pred_region
        %s1710 = ssub.s32 %s18, 2
        // Predicated region
        $region65: #{encoder_forward.1} parent=63 // pred_check
          %p1711 = pneg %p241
        $region66: #{encoder_forward.1} parent=63 // pred_check_branch
          %1713 = sbr.rel (%p1711) target = $region68
        $region67: #{encoder_forward.1} parent=63 // pred_region
          %s1714 = sand.u32 %s226, 1
          %s1715 = scalar_lea.sflag [#allocation3], %s1714
          %s1716 = sand.u32 %s226, 1
          %s1717 = smul.addr %s1716, 32
          %s1718 = scalar_lea.vmem [#allocation2], %s1717
          %1719 = dma.done %s1715, 512
        $region68: #{encoder_forward.1} parent=63 // pred_fallthru
          _
      $region64: #{encoder_forward.1} parent=5 // pred_fallthru
        _
    $region6: #{encoder_forward.1} parent=1 // loop_footer
      %s22 = sadd.s32 1, %s18
    $region7: #{encoder_forward.1} parent=1 // loop_footer_branch
      %17 = sbr.rel target = $region3
    $region8: #{encoder_forward.1} parent=1 // loop_exit
      _
    %1720 = vsyncpa [#allocation3], 1
    %s1721 = scalar_lea.sflag [#allocation3], 1
    %1722 = vsyncpa %s1721, 1

</llo_original>
